<compile_context>
chip_gen: v7x
topology: tpu7x:2x2x1
jax: 0.10.0
libtpu: 0.0.40
codegen_flags: <defaults>
</compile_context>

<pallas_src>
import jax
import jax.numpy as jnp
from jax.experimental import pallas as pl
from jax.experimental.pallas import tpu as pltpu


# ----------------------------------------------------------------------------- utils
def _round_up(x, m):
    return ((x + m - 1) // m) * m


def _pick_tm(batch, tm_max=1024):
    """Adaptive batch tile.

    Tiny batch  : one tile of round_up(B, 16) rows (16 = bf16 sublane packing),
                  so we don't burn 98% of MXU rows on zero padding.
    Medium batch: ~half the batch (>= 2 grid steps) so the "parallel" grid axis
                  can shard across v7x's 2 TensorCores.
    Large batch : capped at tm_max to amortize ~0.35 us/step grid overhead
                  while keeping tiles comfortably inside VMEM.
    """
    b16 = _round_up(max(batch, 1), 16)
    if b16 <= 32:
        return b16
    half = _round_up((b16 + 1) // 2, 16)
    return min(tm_max, half)


# ----------------------------------------------------------------------------- kernel
def encoder_kernel(x_ref, w1_ref, b1_ref, w2_ref, b2_ref, wh_ref, bh_ref, out_ref):
    # In-kernel bf16 cast of the activation tile (kernel is MXU-bound; VPU slack).
    x = x_ref[...].astype(jnp.bfloat16)
    # fc1 + ReLU (bf16 MXU inputs, f32 accumulate, f32 bias/ReLU)
    h = jnp.dot(x, w1_ref[...], preferred_element_type=jnp.float32) + b1_ref[...]
    h = jnp.maximum(h, 0.0).astype(jnp.bfloat16)
    # fc2 + ReLU
    h = jnp.dot(h, w2_ref[...], preferred_element_type=jnp.float32) + b2_ref[...]
    h = jnp.maximum(h, 0.0).astype(jnp.bfloat16)
    # fused (fc31 | fc32) head, lane-dense 128-padded output slab
    out_ref[...] = (
        jnp.dot(h, wh_ref[...], preferred_element_type=jnp.float32) + bh_ref[...]
    )


# ----------------------------------------------------------------------------- param prep (one-time)
def prepare_params(params):
    """One-time weight preparation. Call once; reuse the result every forward.

    Fuses the mu/logvar heads, pads the head to 128 lanes, pads K to a 256
    multiple (clean 256x256 MXU weight tiles on v6e/v7x), and casts matmul
    weights to bf16 (biases stay f32).
    """
    w1, b1, w2, b2, w31, b31, w32, b32 = params
    in_features = w1.shape[0]
    latent = w31.shape[1]

    # Fused head, padded to a multiple of 128 lanes.
    wh = jnp.concatenate([w31, w32], axis=1)          # (256, 2*latent)
    bh = jnp.concatenate([b31, b32], axis=1)          # (1,   2*latent)
    head = 2 * latent
    head_pad = _round_up(head, 128)
    if head_pad != head:
        wh = jnp.pad(wh, ((0, 0), (0, head_pad - head)))
        bh = jnp.pad(bh, ((0, 0), (0, head_pad - head)))

    # Pad K up to a 256 multiple (zero rows contribute nothing).
    in_pad = _round_up(in_features, 256)
    if in_pad != in_features:
        w1 = jnp.pad(w1, ((0, in_pad - in_features), (0, 0)))

    return {
        "w1": w1.astype(jnp.bfloat16), "b1": b1.astype(jnp.float32),
        "w2": w2.astype(jnp.bfloat16), "b2": b2.astype(jnp.float32),
        "wh": wh.astype(jnp.bfloat16), "bh": bh.astype(jnp.float32),
        "latent": latent, "head": head, "head_pad": head_pad,
        "in_features": in_features, "in_features_pad": in_pad,
    }


# ----------------------------------------------------------------------------- forward
def encoder_forward(x, prepped, *, tm=None):
    """x: (B, S, D) float32. Returns (mu, logvar), each (B, latent) float32."""
    B = x.shape[0]
    x_flat = x.reshape(B, -1).astype(jnp.float32)      # torch's x.view(x.size(0), -1)

    in_features = prepped["in_features"]
    in_pad = prepped["in_features_pad"]
    head = prepped["head"]
    head_pad = prepped["head_pad"]
    latent = prepped["latent"]
    assert x_flat.shape[1] == in_features, "input feature dim mismatch"

    if in_pad != in_features:
        x_flat = jnp.pad(x_flat, ((0, 0), (0, in_pad - in_features)))

    # Adaptive batch tile and batch padding.
    if tm is None:
        tm = _pick_tm(B)
    b_pad = _round_up(max(B, 1), tm)
    if b_pad != B:
        x_flat = jnp.pad(x_flat, ((0, b_pad - B), (0, 0)))

    grid = (b_pad // tm,)

    w1, b1 = prepped["w1"], prepped["b1"]
    w2, b2 = prepped["w2"], prepped["b2"]
    wh, bh = prepped["wh"], prepped["bh"]

    def resident(shape):
        # Weights/biases: same block every grid step -> stay VMEM-resident.
        return pl.BlockSpec(shape, lambda i: (0, 0))

    # Working set: ~1.2 MiB resident weights + double-buffered x/out tiles.
    vmem_limit = (32 << 20) if tm >= 512 else (16 << 20)

    out = pl.pallas_call(
        encoder_kernel,
        out_shape=jax.ShapeDtypeStruct((b_pad, head_pad), jnp.float32),
        grid=grid,
        in_specs=[
            pl.BlockSpec((tm, in_pad), lambda i: (i, 0)),    # activations: tiled over batch
            resident(w1.shape), resident(b1.shape),
            resident(w2.shape), resident(b2.shape),
            resident(wh.shape), resident(bh.shape),
        ],
        out_specs=pl.BlockSpec((tm, head_pad), lambda i: (i, 0)),
        compiler_params=pltpu.CompilerParams(
            dimension_semantics=("parallel",),   # batch tiles shard across v7x's 2 TCs
            vmem_limit_bytes=vmem_limit,
        ),
    )(x_flat, w1, b1, w2, b2, wh, bh)

    # Padded batch rows carry ReLU(b)-propagated garbage: the [:B] slice is required.
    mu = out[:B, :latent]
    logvar = out[:B, latent:head]
    return mu, logvar


# ----------------------------------------------------------------------------- reference & test
def init_params(key, in_features, latent_dim):
    """Deterministic synthetic params. Weights stored as (in, out); biases (1, out)."""
    dims = [(in_features, 1024), (1024, 256), (256, latent_dim), (256, latent_dim)]
    params = []
    for i, (din, dout) in enumerate(dims):
        kw, kb = jax.random.split(jax.random.fold_in(key, i))
        scale = 1.0 / jnp.sqrt(jnp.float32(din))
        w = jax.random.uniform(kw, (din, dout), jnp.float32, -scale, scale)
        b = jax.random.uniform(kb, (1, dout), jnp.float32, -scale, scale)
        params += [w, b]
    return tuple(params)


def encoder_reference(x, params):
    """Pure-JAX f32 reference of the PyTorch forward."""
    w1, b1, w2, b2, w31, b31, w32, b32 = params
    h = x.reshape(x.shape[0], -1)
    h = jnp.maximum(h @ w1 + b1, 0.0)
    h = jnp.maximum(h @ w2 + b2, 0.0)
    return h @ w31 + b31, h @ w32 + b32


if __name__ == "__main__":
    # Small shapes consistent with the module: Encoder(input_dim=(8, 32), latent_dim=32)
    B, S, D = 2, 8, 32
    latent_dim = 32
    in_features = S * D

    key = jax.random.PRNGKey(0)
    kx, kp = jax.random.split(key)
    x = jax.random.normal(kx, (B, S, D), jnp.float32)
    params = init_params(kp, in_features, latent_dim)

    prepped = prepare_params(params)                 # one-time weight prep (hoisted out of forward)
    mu, logvar = jax.block_until_ready(encoder_forward(x, prepped))
    mu_ref, logvar_ref = encoder_reference(x, params)

    assert mu.shape == (B, latent_dim) and logvar.shape == (B, latent_dim)
    # bf16 matmul inputs (f32 accumulation) -> relaxed tolerance vs f32 reference.
    # Note for downstream users: logvar feeds exp(), which amplifies this error.
    assert jnp.allclose(mu, mu_ref, atol=2e-2, rtol=2e-2)
    assert jnp.allclose(logvar, logvar_ref, atol=2e-2, rtol=2e-2)
    print("KERNEL_OK")
</pallas_src>

<mosaic_0001>
module attributes {stable_mosaic.version = 11 : i64} {
  func.func @encoder_kernel(%arg0: i32, %arg1: memref<16x256xf32, #tpu.memory_space<vmem>>, %arg2: memref<256x1024xbf16, #tpu.memory_space<vmem>>, %arg3: memref<1x1024xf32, #tpu.memory_space<vmem>>, %arg4: memref<1024x256xbf16, #tpu.memory_space<vmem>>, %arg5: memref<1x256xf32, #tpu.memory_space<vmem>>, %arg6: memref<256x128xbf16, #tpu.memory_space<vmem>>, %arg7: memref<1x128xf32, #tpu.memory_space<vmem>>, %arg8: memref<16x128xf32, #tpu.memory_space<vmem>>) attributes {dimension_semantics = [#tpu.dimension_semantics<parallel>], iteration_bounds = array<i64: 1>, scalar_prefetch = 0 : i64, scratch_operands = 0 : i64, tpu.core_type = #tpu.core_type<tc>, window_params = [{transform_indices = @transform_0, window_bounds = array<i64: 16, 256>}, {pipeline_mode = #tpu.pipeline_mode<synchronous>, transform_indices = @transform_1, window_bounds = array<i64: 256, 1024>}, {pipeline_mode = #tpu.pipeline_mode<synchronous>, transform_indices = @transform_2, window_bounds = array<i64: 1, 1024>}, {pipeline_mode = #tpu.pipeline_mode<synchronous>, transform_indices = @transform_3, window_bounds = array<i64: 1024, 256>}, {pipeline_mode = #tpu.pipeline_mode<synchronous>, transform_indices = @transform_4, window_bounds = array<i64: 1, 256>}, {pipeline_mode = #tpu.pipeline_mode<synchronous>, transform_indices = @transform_5, window_bounds = array<i64: 256, 128>}, {pipeline_mode = #tpu.pipeline_mode<synchronous>, transform_indices = @transform_6, window_bounds = array<i64: 1, 128>}, {transform_indices = @transform_7, window_bounds = array<i64: 16, 128>}]} {
    %c0 = arith.constant 0 : index
    %c0_0 = arith.constant 0 : index
    %0 = vector.load %arg1[%c0, %c0_0] : memref<16x256xf32, #tpu.memory_space<vmem>>, vector<16x256xf32>
    %1 = arith.truncf %0 : vector<16x256xf32> to vector<16x256xbf16>
    %c0_1 = arith.constant 0 : index
    %c0_2 = arith.constant 0 : index
    %2 = vector.load %arg2[%c0_1, %c0_2] : memref<256x1024xbf16, #tpu.memory_space<vmem>>, vector<256x1024xbf16>
    %cst = arith.constant dense<0.000000e+00> : vector<16x1024xf32>
    %3 = tpu.matmul %1, %2, %cst {dimension_numbers = #tpu.dot_dimension_numbers<[1], [0], [0], [1], [0, 0, 1, 1], [], []>} : vector<16x256xbf16>, vector<256x1024xbf16>, vector<16x1024xf32> -> vector<16x1024xf32>
    %c0_3 = arith.constant 0 : index
    %c0_4 = arith.constant 0 : index
    %4 = vector.load %arg3[%c0_3, %c0_4] : memref<1x1024xf32, #tpu.memory_space<vmem>>, vector<1x1024xf32>
    %5 = vector.broadcast %4 : vector<1x1024xf32> to vector<16x1024xf32>
    %6 = arith.addf %3, %5 : vector<16x1024xf32>
    %cst_5 = arith.constant 0.000000e+00 : f32
    %7 = vector.broadcast %cst_5 : f32 to vector<16x1024xf32>
    %8 = arith.maximumf %6, %7 : vector<16x1024xf32>
    %9 = arith.truncf %8 : vector<16x1024xf32> to vector<16x1024xbf16>
    %c0_6 = arith.constant 0 : index
    %c0_7 = arith.constant 0 : index
    %10 = vector.load %arg4[%c0_6, %c0_7] : memref<1024x256xbf16, #tpu.memory_space<vmem>>, vector<1024x256xbf16>
    %cst_8 = arith.constant dense<0.000000e+00> : vector<16x256xf32>
    %11 = tpu.matmul %9, %10, %cst_8 {dimension_numbers = #tpu.dot_dimension_numbers<[1], [0], [0], [1], [0, 0, 1, 1], [], []>} : vector<16x1024xbf16>, vector<1024x256xbf16>, vector<16x256xf32> -> vector<16x256xf32>
    %c0_9 = arith.constant 0 : index
    %c0_10 = arith.constant 0 : index
    %12 = vector.load %arg5[%c0_9, %c0_10] : memref<1x256xf32, #tpu.memory_space<vmem>>, vector<1x256xf32>
    %13 = vector.broadcast %12 : vector<1x256xf32> to vector<16x256xf32>
    %14 = arith.addf %11, %13 : vector<16x256xf32>
    %cst_11 = arith.constant 0.000000e+00 : f32
    %15 = vector.broadcast %cst_11 : f32 to vector<16x256xf32>
    %16 = arith.maximumf %14, %15 : vector<16x256xf32>
    %17 = arith.truncf %16 : vector<16x256xf32> to vector<16x256xbf16>
    %c0_12 = arith.constant 0 : index
    %c0_13 = arith.constant 0 : index
    %18 = vector.load %arg6[%c0_12, %c0_13] : memref<256x128xbf16, #tpu.memory_space<vmem>>, vector<256x128xbf16>
    %cst_14 = arith.constant dense<0.000000e+00> : vector<16x128xf32>
    %19 = tpu.matmul %17, %18, %cst_14 {dimension_numbers = #tpu.dot_dimension_numbers<[1], [0], [0], [1], [0, 0, 1, 1], [], []>} : vector<16x256xbf16>, vector<256x128xbf16>, vector<16x128xf32> -> vector<16x128xf32>
    %c0_15 = arith.constant 0 : index
    %c0_16 = arith.constant 0 : index
    %20 = vector.load %arg7[%c0_15, %c0_16] : memref<1x128xf32, #tpu.memory_space<vmem>>, vector<1x128xf32>
    %21 = vector.broadcast %20 : vector<1x128xf32> to vector<16x128xf32>
    %22 = arith.addf %19, %21 : vector<16x128xf32>
    %c0_17 = arith.constant 0 : index
    %c0_18 = arith.constant 0 : index
    %23 = vector.load %arg8[%c0_17, %c0_18] : memref<16x128xf32, #tpu.memory_space<vmem>>, vector<16x128xf32>
    tpu.vector_store %arg8[%c0_17, %c0_18], %22 {strides = array<i32>} : memref<16x128xf32, #tpu.memory_space<vmem>>, vector<16x128xf32>,
    return
  }
  func.func @transform_0(%arg0: i32) -> (i32, i32) {
    %c0_i32 = arith.constant 0 : i32
    %c0_i32_0 = arith.constant 0 : i32
    return %arg0, %c0_i32 : i32, i32
  }
  func.func @transform_1(%arg0: i32) -> (i32, i32) {
    %c0_i32 = arith.constant 0 : i32
    %c0_i32_0 = arith.constant 0 : i32
    %c0_i32_1 = arith.constant 0 : i32
    return %c0_i32, %c0_i32_0 : i32, i32
  }
  func.func @transform_2(%arg0: i32) -> (i32, i32) {
    %c0_i32 = arith.constant 0 : i32
    %c0_i32_0 = arith.constant 0 : i32
    %c0_i32_1 = arith.constant 0 : i32
    return %c0_i32, %c0_i32_0 : i32, i32
  }
  func.func @transform_3(%arg0: i32) -> (i32, i32) {
    %c0_i32 = arith.constant 0 : i32
    %c0_i32_0 = arith.constant 0 : i32
    %c0_i32_1 = arith.constant 0 : i32
    return %c0_i32, %c0_i32_0 : i32, i32
  }
  func.func @transform_4(%arg0: i32) -> (i32, i32) {
    %c0_i32 = arith.constant 0 : i32
    %c0_i32_0 = arith.constant 0 : i32
    %c0_i32_1 = arith.constant 0 : i32
    return %c0_i32, %c0_i32_0 : i32, i32
  }
  func.func @transform_5(%arg0: i32) -> (i32, i32) {
    %c0_i32 = arith.constant 0 : i32
    %c0_i32_0 = arith.constant 0 : i32
    %c0_i32_1 = arith.constant 0 : i32
    return %c0_i32, %c0_i32_0 : i32, i32
  }
  func.func @transform_6(%arg0: i32) -> (i32, i32) {
    %c0_i32 = arith.constant 0 : i32
    %c0_i32_0 = arith.constant 0 : i32
    %c0_i32_1 = arith.constant 0 : i32
    return %c0_i32, %c0_i32_0 : i32, i32
  }
  func.func @transform_7(%arg0: i32) -> (i32, i32) {
    %c0_i32 = arith.constant 0 : i32
    %c0_i32_0 = arith.constant 0 : i32
    return %arg0, %c0_i32 : i32, i32
  }
}

</mosaic_0001>

<llo_original>
// kernel: tpu_custom_call.1
$region0: #{tpu_custom_call.1}
  #allocation0 [shape = 'u32[]', space=smem, size = 0x4, offset = 0x4, fixed_abs, tag = 'smem constant byte address 0x4 - core index']
  #allocation1 [shape = 'u32[144,128]{1,0:T(1,128)}', space=vmem, size = 0x12000, scoped, tag = 'internal scratch']
  %s0 = inlined_call_operand.hbm [shape: f32[16,256], index: 0, kind: input, shape index: {}]
  %s1 = inlined_call_operand.hbm [shape: bf16[256,1024], index: 1, kind: input, shape index: {}]
  %s2 = inlined_call_operand.hbm [shape: f32[1,1024], index: 2, kind: input, shape index: {}]
  %s3 = inlined_call_operand.hbm [shape: bf16[1024,256], index: 3, kind: input, shape index: {}]
  %s4 = inlined_call_operand.vmem [shape: f32[1,256], index: 4, kind: input, shape index: {}]
  %s5 = inlined_call_operand.hbm [shape: bf16[256,128], index: 5, kind: input, shape index: {}]
  %s6 = inlined_call_operand.vmem [shape: f32[1,128], index: 6, kind: input, shape index: {}]
  %s7 = inlined_call_operand.hbm [shape: f32[16,128], index: 7, kind: output, shape index: {}]
  %s8 = sld [smem:[#allocation0]]
  $region58: #{tpu_custom_call.1} parent=0
    _
  %s10 = ssub.s32 1, %s8
  %s11 = scalar_select 0, %s10, %s8
  $region1: #{tpu_custom_call.1} parent=0
    #allocation2 [shape = 'u8[16384]{0}', space=vmem, size = 0x4000, scoped, tag = 'input window, operand 0, single buffered']
    #allocation3 [shape = 's32[1]{0}', space=sflag, size = 0x4, scoped, tag = 'scoped memory for tpu_custom_call.1']
    #allocation4 [shape = 's32[1]{0}', space=sflag, size = 0x4, scoped, tag = 'scoped memory for tpu_custom_call.1']
    #allocation5 [shape = 'u8[524288]{0}', space=vmem, size = 0x80000, scoped, tag = 'input window, operand 1, single buffered']
    #allocation6 [shape = 's32[1]{0}', space=sflag, size = 0x4, scoped, tag = 'scoped memory for tpu_custom_call.1']
    #allocation7 [shape = 'u8[4096]{0}', space=vmem, size = 0x1000, scoped, tag = 'input window, operand 2, single buffered']
    #allocation8 [shape = 'u8[524288]{0}', space=vmem, size = 0x80000, scoped, tag = 'input window, operand 3, single buffered']
    #allocation9 [shape = 's32[1]{0}', space=sflag, size = 0x4, scoped, tag = 'scoped memory for tpu_custom_call.1']
    #allocation10 [shape = 'u8[65536]{0}', space=vmem, size = 0x10000, scoped, tag = 'input window, operand 5, single buffered']
    #allocation11 [shape = 'u8[8192]{0}', space=vmem, size = 0x2000, scoped, tag = 'output window, operand 0, single buffered']
    %12 = vsyncpa [#allocation3], 0
    %13 = vsyncpa [#allocation6], 0
    %14 = vsyncpa [#allocation9], 0
    %15 = vsyncpa [#allocation4], 0
    // Predicated region
    $region2: #{tpu_custom_call.1} parent=1 // pred_check
      _
    $region3: #{tpu_custom_call.1} parent=1 // pred_check_branch
      %17 = sbr.rel (0) target = $region5
    $region4: #{tpu_custom_call.1} parent=1 // pred_region
      %s19 = ssub.s32 512, 512
      %20 = vsyncadd [#allocation3], %s19
      %s21 = sshll.u32 [#allocation2], 4
      %s22 = int_to_ptr.vmem [resolvable:$true] %s21
      %27 = dma.hbm_to_vmem [thread:$0]  %s0, 512, %s22, [#allocation3], 256, 256, 16
    $region5: #{tpu_custom_call.1} parent=1 // pred_fallthru
      _
    // Predicated region
    $region6: #{tpu_custom_call.1} parent=1 // pred_check
      _
    $region7: #{tpu_custom_call.1} parent=1 // pred_check_branch
      %29 = sbr.rel (0) target = $region9
    $region8: #{tpu_custom_call.1} parent=1 // pred_region
      %s31 = ssub.s32 16384, 16384
      %32 = vsyncadd [#allocation6], %s31
      %s33 = sshll.u32 [#allocation5], 4
      %s34 = int_to_ptr.vmem [resolvable:$true] %s33
      %39 = dma.hbm_to_vmem [thread:$0]  %s1, 16384, %s34, [#allocation6], 512, 512, 32
    $region9: #{tpu_custom_call.1} parent=1 // pred_fallthru
      _
    // Predicated region
    $region10: #{tpu_custom_call.1} parent=1 // pred_check
      _
    $region11: #{tpu_custom_call.1} parent=1 // pred_check_branch
      %41 = sbr.rel (0) target = $region13
    $region12: #{tpu_custom_call.1} parent=1 // pred_region
      %s43 = ssub.s32 128, 128
      %44 = vsyncadd [#allocation6], %s43
      %s46 = sshll.u32 [#allocation7], 4
      %s47 = int_to_ptr.vmem [resolvable:$true] %s46
      %49 = dma.hbm_to_vmem [thread:$0]  %s2, 128, %s47, [#allocation6]
    $region13: #{tpu_custom_call.1} parent=1 // pred_fallthru
      _
    // Predicated region
    $region14: #{tpu_custom_call.1} parent=1 // pred_check
      _
    $region15: #{tpu_custom_call.1} parent=1 // pred_check_branch
      %51 = sbr.rel (0) target = $region17
    $region16: #{tpu_custom_call.1} parent=1 // pred_region
      %s53 = ssub.s32 16384, 16384
      %54 = vsyncadd [#allocation9], %s53
      %s55 = sshll.u32 [#allocation8], 4
      %s56 = int_to_ptr.vmem [resolvable:$true] %s55
      %61 = dma.hbm_to_vmem [thread:$0]  %s3, 16384, %s56, [#allocation9], 128, 128, 8
    $region17: #{tpu_custom_call.1} parent=1 // pred_fallthru
      _
    // Predicated region
    $region18: #{tpu_custom_call.1} parent=1 // pred_check
      _
    $region19: #{tpu_custom_call.1} parent=1 // pred_check_branch
      %63 = sbr.rel (0) target = $region21
    $region20: #{tpu_custom_call.1} parent=1 // pred_region
      _
    $region21: #{tpu_custom_call.1} parent=1 // pred_fallthru
      _
    // Predicated region
    $region22: #{tpu_custom_call.1} parent=1 // pred_check
      _
    $region23: #{tpu_custom_call.1} parent=1 // pred_check_branch
      %65 = sbr.rel (0) target = $region25
    $region24: #{tpu_custom_call.1} parent=1 // pred_region
      %s67 = ssub.s32 2048, 2048
      %68 = vsyncadd [#allocation9], %s67
      %s69 = sshll.u32 [#allocation10], 4
      %s70 = int_to_ptr.vmem [resolvable:$true] %s69
      %75 = dma.hbm_to_vmem [thread:$0]  %s5, 2048, %s70, [#allocation9], 64, 64, 4
    $region25: #{tpu_custom_call.1} parent=1 // pred_fallthru
      _
    // Predicated region
    $region26: #{tpu_custom_call.1} parent=1 // pred_check
      _
    $region27: #{tpu_custom_call.1} parent=1 // pred_check_branch
      %77 = sbr.rel (0) target = $region29
    $region28: #{tpu_custom_call.1} parent=1 // pred_region
      _
    $region29: #{tpu_custom_call.1} parent=1 // pred_fallthru
      _
    // Predicated region
    $region30: #{tpu_custom_call.1} parent=1 // pred_check
      _
    $region31: #{tpu_custom_call.1} parent=1 // pred_check_branch
      %79 = sbr.rel (0) target = $region33
    $region32: #{tpu_custom_call.1} parent=1 // pred_region
      %80 = dma.done [#allocation3], 512
    $region33: #{tpu_custom_call.1} parent=1 // pred_fallthru
      _
    // Predicated region
    $region34: #{tpu_custom_call.1} parent=1 // pred_check
      _
    $region35: #{tpu_custom_call.1} parent=1 // pred_check_branch
      %82 = sbr.rel (0) target = $region37
    $region36: #{tpu_custom_call.1} parent=1 // pred_region
      %83 = dma.done [#allocation6], 16384
    $region37: #{tpu_custom_call.1} parent=1 // pred_fallthru
      _
    // Predicated region
    $region38: #{tpu_custom_call.1} parent=1 // pred_check
      _
    $region39: #{tpu_custom_call.1} parent=1 // pred_check_branch
      %85 = sbr.rel (0) target = $region41
    $region40: #{tpu_custom_call.1} parent=1 // pred_region
      %86 = dma.done [#allocation6], 128
    $region41: #{tpu_custom_call.1} parent=1 // pred_fallthru
      _
    // Predicated region
    $region42: #{tpu_custom_call.1} parent=1 // pred_check
      _
    $region43: #{tpu_custom_call.1} parent=1 // pred_check_branch
      %88 = sbr.rel (0) target = $region45
    $region44: #{tpu_custom_call.1} parent=1 // pred_region
      %89 = dma.done [#allocation9], 16384
    $region45: #{tpu_custom_call.1} parent=1 // pred_fallthru
      _
    // Predicated region
    $region46: #{tpu_custom_call.1} parent=1 // pred_check
      _
    $region47: #{tpu_custom_call.1} parent=1 // pred_check_branch
      %91 = sbr.rel (0) target = $region49
    $region48: #{tpu_custom_call.1} parent=1 // pred_region
      %92 = dma.done [#allocation9], 2048
    $region49: #{tpu_custom_call.1} parent=1 // pred_fallthru
      _
    %v94 = vld [vmem:[#allocation2] sm:$0xff]
    %v95 = vld [vmem:[#allocation2 + $0x8] sm:$0xff]
    %v96 = vld [vmem:[#allocation2 + $0x10] sm:$0xff]
    %v97 = vld [vmem:[#allocation2 + $0x18] sm:$0xff]
    %v98 = vpack.c.bf16 %v96, %v94
    %v99 = vpack.c.bf16 %v97, %v95
    %v100 = vld [vmem:[#allocation5] sm:$0xff]
    %v101 = vld [vmem:[#allocation5 + $0x8] sm:$0xff]
    %v102 = vld [vmem:[#allocation5 + $0x10] sm:$0xff]
    %v103 = vld [vmem:[#allocation5 + $0x18] sm:$0xff]
    %v104 = vld [vmem:[#allocation5 + $0x20] sm:$0xff]
    %v105 = vld [vmem:[#allocation5 + $0x28] sm:$0xff]
    %v106 = vld [vmem:[#allocation5 + $0x30] sm:$0xff]
    %v107 = vld [vmem:[#allocation5 + $0x38] sm:$0xff]
    %v108 = vld [vmem:[#allocation5 + $0x40] sm:$0xff]
    %v109 = vld [vmem:[#allocation5 + $0x48] sm:$0xff]
    %v110 = vld [vmem:[#allocation5 + $0x50] sm:$0xff]
    %v111 = vld [vmem:[#allocation5 + $0x58] sm:$0xff]
    %v112 = vld [vmem:[#allocation5 + $0x60] sm:$0xff]
    %v113 = vld [vmem:[#allocation5 + $0x68] sm:$0xff]
    %v114 = vld [vmem:[#allocation5 + $0x70] sm:$0xff]
    %v115 = vld [vmem:[#allocation5 + $0x78] sm:$0xff]
    %v116 = vld [vmem:[#allocation5 + $0x80] sm:$0xff]
    %v117 = vld [vmem:[#allocation5 + $0x88] sm:$0xff]
    %v118 = vld [vmem:[#allocation5 + $0x90] sm:$0xff]
    %v119 = vld [vmem:[#allocation5 + $0x98] sm:$0xff]
    %v120 = vld [vmem:[#allocation5 + $0xa0] sm:$0xff]
    %v121 = vld [vmem:[#allocation5 + $0xa8] sm:$0xff]
    %v122 = vld [vmem:[#allocation5 + $0xb0] sm:$0xff]
    %v123 = vld [vmem:[#allocation5 + $0xb8] sm:$0xff]
    %v124 = vld [vmem:[#allocation5 + $0xc0] sm:$0xff]
    %v125 = vld [vmem:[#allocation5 + $0xc8] sm:$0xff]
    %v126 = vld [vmem:[#allocation5 + $0xd0] sm:$0xff]
    %v127 = vld [vmem:[#allocation5 + $0xd8] sm:$0xff]
    %v128 = vld [vmem:[#allocation5 + $0xe0] sm:$0xff]
    %v129 = vld [vmem:[#allocation5 + $0xe8] sm:$0xff]
    %v130 = vld [vmem:[#allocation5 + $0xf0] sm:$0xff]
    %v131 = vld [vmem:[#allocation5 + $0xf8] sm:$0xff]
    %v132 = vld [vmem:[#allocation5 + $0x100] sm:$0xff]
    %v133 = vld [vmem:[#allocation5 + $0x108] sm:$0xff]
    %v134 = vld [vmem:[#allocation5 + $0x110] sm:$0xff]
    %v135 = vld [vmem:[#allocation5 + $0x118] sm:$0xff]
    %v136 = vld [vmem:[#allocation5 + $0x120] sm:$0xff]
    %v137 = vld [vmem:[#allocation5 + $0x128] sm:$0xff]
    %v138 = vld [vmem:[#allocation5 + $0x130] sm:$0xff]
    %v139 = vld [vmem:[#allocation5 + $0x138] sm:$0xff]
    %v140 = vld [vmem:[#allocation5 + $0x140] sm:$0xff]
    %v141 = vld [vmem:[#allocation5 + $0x148] sm:$0xff]
    %v142 = vld [vmem:[#allocation5 + $0x150] sm:$0xff]
    %v143 = vld [vmem:[#allocation5 + $0x158] sm:$0xff]
    %v144 = vld [vmem:[#allocation5 + $0x160] sm:$0xff]
    %v145 = vld [vmem:[#allocation5 + $0x168] sm:$0xff]
    %v146 = vld [vmem:[#allocation5 + $0x170] sm:$0xff]
    %v147 = vld [vmem:[#allocation5 + $0x178] sm:$0xff]
    %v148 = vld [vmem:[#allocation5 + $0x180] sm:$0xff]
    %v149 = vld [vmem:[#allocation5 + $0x188] sm:$0xff]
    %v150 = vld [vmem:[#allocation5 + $0x190] sm:$0xff]
    %v151 = vld [vmem:[#allocation5 + $0x198] sm:$0xff]
    %v152 = vld [vmem:[#allocation5 + $0x1a0] sm:$0xff]
    %v153 = vld [vmem:[#allocation5 + $0x1a8] sm:$0xff]
    %v154 = vld [vmem:[#allocation5 + $0x1b0] sm:$0xff]
    %v155 = vld [vmem:[#allocation5 + $0x1b8] sm:$0xff]
    %v156 = vld [vmem:[#allocation5 + $0x1c0] sm:$0xff]
    %v157 = vld [vmem:[#allocation5 + $0x1c8] sm:$0xff]
    %v158 = vld [vmem:[#allocation5 + $0x1d0] sm:$0xff]
    %v159 = vld [vmem:[#allocation5 + $0x1d8] sm:$0xff]
    %v160 = vld [vmem:[#allocation5 + $0x1e0] sm:$0xff]
    %v161 = vld [vmem:[#allocation5 + $0x1e8] sm:$0xff]
    %v162 = vld [vmem:[#allocation5 + $0x1f0] sm:$0xff]
    %v163 = vld [vmem:[#allocation5 + $0x1f8] sm:$0xff]
    %v164 = vld [vmem:[#allocation5 + $0x200] sm:$0xff]
    %v165 = vld [vmem:[#allocation5 + $0x208] sm:$0xff]
    %v166 = vld [vmem:[#allocation5 + $0x210] sm:$0xff]
    %v167 = vld [vmem:[#allocation5 + $0x218] sm:$0xff]
    %v168 = vld [vmem:[#allocation5 + $0x220] sm:$0xff]
    %v169 = vld [vmem:[#allocation5 + $0x228] sm:$0xff]
    %v170 = vld [vmem:[#allocation5 + $0x230] sm:$0xff]
    %v171 = vld [vmem:[#allocation5 + $0x238] sm:$0xff]
    %v172 = vld [vmem:[#allocation5 + $0x240] sm:$0xff]
    %v173 = vld [vmem:[#allocation5 + $0x248] sm:$0xff]
    %v174 = vld [vmem:[#allocation5 + $0x250] sm:$0xff]
    %v175 = vld [vmem:[#allocation5 + $0x258] sm:$0xff]
    %v176 = vld [vmem:[#allocation5 + $0x260] sm:$0xff]
    %v177 = vld [vmem:[#allocation5 + $0x268] sm:$0xff]
    %v178 = vld [vmem:[#allocation5 + $0x270] sm:$0xff]
    %v179 = vld [vmem:[#allocation5 + $0x278] sm:$0xff]
    %v180 = vld [vmem:[#allocation5 + $0x280] sm:$0xff]
    %v181 = vld [vmem:[#allocation5 + $0x288] sm:$0xff]
    %v182 = vld [vmem:[#allocation5 + $0x290] sm:$0xff]
    %v183 = vld [vmem:[#allocation5 + $0x298] sm:$0xff]
    %v184 = vld [vmem:[#allocation5 + $0x2a0] sm:$0xff]
    %v185 = vld [vmem:[#allocation5 + $0x2a8] sm:$0xff]
    %v186 = vld [vmem:[#allocation5 + $0x2b0] sm:$0xff]
    %v187 = vld [vmem:[#allocation5 + $0x2b8] sm:$0xff]
    %v188 = vld [vmem:[#allocation5 + $0x2c0] sm:$0xff]
    %v189 = vld [vmem:[#allocation5 + $0x2c8] sm:$0xff]
    %v190 = vld [vmem:[#allocation5 + $0x2d0] sm:$0xff]
    %v191 = vld [vmem:[#allocation5 + $0x2d8] sm:$0xff]
    %v192 = vld [vmem:[#allocation5 + $0x2e0] sm:$0xff]
    %v193 = vld [vmem:[#allocation5 + $0x2e8] sm:$0xff]
    %v194 = vld [vmem:[#allocation5 + $0x2f0] sm:$0xff]
    %v195 = vld [vmem:[#allocation5 + $0x2f8] sm:$0xff]
    %v196 = vld [vmem:[#allocation5 + $0x300] sm:$0xff]
    %v197 = vld [vmem:[#allocation5 + $0x308] sm:$0xff]
    %v198 = vld [vmem:[#allocation5 + $0x310] sm:$0xff]
    %v199 = vld [vmem:[#allocation5 + $0x318] sm:$0xff]
    %v200 = vld [vmem:[#allocation5 + $0x320] sm:$0xff]
    %v201 = vld [vmem:[#allocation5 + $0x328] sm:$0xff]
    %v202 = vld [vmem:[#allocation5 + $0x330] sm:$0xff]
    %v203 = vld [vmem:[#allocation5 + $0x338] sm:$0xff]
    %v204 = vld [vmem:[#allocation5 + $0x340] sm:$0xff]
    %v205 = vld [vmem:[#allocation5 + $0x348] sm:$0xff]
    %v206 = vld [vmem:[#allocation5 + $0x350] sm:$0xff]
    %v207 = vld [vmem:[#allocation5 + $0x358] sm:$0xff]
    %v208 = vld [vmem:[#allocation5 + $0x360] sm:$0xff]
    %v209 = vld [vmem:[#allocation5 + $0x368] sm:$0xff]
    %v210 = vld [vmem:[#allocation5 + $0x370] sm:$0xff]
    %v211 = vld [vmem:[#allocation5 + $0x378] sm:$0xff]
    %v212 = vld [vmem:[#allocation5 + $0x380] sm:$0xff]
    %v213 = vld [vmem:[#allocation5 + $0x388] sm:$0xff]
    %v214 = vld [vmem:[#allocation5 + $0x390] sm:$0xff]
    %v215 = vld [vmem:[#allocation5 + $0x398] sm:$0xff]
    %v216 = vld [vmem:[#allocation5 + $0x3a0] sm:$0xff]
    %v217 = vld [vmem:[#allocation5 + $0x3a8] sm:$0xff]
    %v218 = vld [vmem:[#allocation5 + $0x3b0] sm:$0xff]
    %v219 = vld [vmem:[#allocation5 + $0x3b8] sm:$0xff]
    %v220 = vld [vmem:[#allocation5 + $0x3c0] sm:$0xff]
    %v221 = vld [vmem:[#allocation5 + $0x3c8] sm:$0xff]
    %v222 = vld [vmem:[#allocation5 + $0x3d0] sm:$0xff]
    %v223 = vld [vmem:[#allocation5 + $0x3d8] sm:$0xff]
    %v224 = vld [vmem:[#allocation5 + $0x3e0] sm:$0xff]
    %v225 = vld [vmem:[#allocation5 + $0x3e8] sm:$0xff]
    %v226 = vld [vmem:[#allocation5 + $0x3f0] sm:$0xff]
    %v227 = vld [vmem:[#allocation5 + $0x3f8] sm:$0xff]
    %v228 = vld [vmem:[#allocation7] sm:$0xff]
    %v230 = vlaneseq
    %v231 = vshrl.u32 %v230, 7
    %v232 = vsub.s32 0, %v231
    %v233 = vrot.slane %v228, %v232
    %v234 = vlaneseq
    %v235 = vshrl.u32 %v234, 7
    %v236 = vsub.s32 1, %v235
    %v237 = vrot.slane %v228, %v236
    %v238 = vlaneseq
    %v239 = vshrl.u32 %v238, 7
    %v240 = vsub.s32 2, %v239
    %v241 = vrot.slane %v228, %v240
    %v242 = vlaneseq
    %v243 = vshrl.u32 %v242, 7
    %v244 = vsub.s32 3, %v243
    %v245 = vrot.slane %v228, %v244
    %v246 = vlaneseq
    %v247 = vshrl.u32 %v246, 7
    %v248 = vsub.s32 4, %v247
    %v249 = vrot.slane %v228, %v248
    %v250 = vlaneseq
    %v251 = vshrl.u32 %v250, 7
    %v252 = vsub.s32 5, %v251
    %v253 = vrot.slane %v228, %v252
    %v254 = vlaneseq
    %v255 = vshrl.u32 %v254, 7
    %v256 = vsub.s32 6, %v255
    %v257 = vrot.slane %v228, %v256
    %v258 = vlaneseq
    %v259 = vshrl.u32 %v258, 7
    %v260 = vsub.s32 7, %v259
    %v261 = vrot.slane %v228, %v260
    %v398 = vunpack.c.l.b16 %v100
    %v399 = vunpack.c.h.b16 %v100
    %v400 = vunpack.c.l.b16 %v101
    %v401 = vunpack.c.h.b16 %v101
    %v402 = vunpack.c.l.b16 %v102
    %v403 = vunpack.c.h.b16 %v102
    %v404 = vunpack.c.l.b16 %v103
    %v405 = vunpack.c.h.b16 %v103
    %v406 = vunpack.c.l.b16 %v104
    %v407 = vunpack.c.h.b16 %v104
    %v408 = vunpack.c.l.b16 %v105
    %v409 = vunpack.c.h.b16 %v105
    %v410 = vunpack.c.l.b16 %v106
    %v411 = vunpack.c.h.b16 %v106
    %v412 = vunpack.c.l.b16 %v107
    %v413 = vunpack.c.h.b16 %v107
    %v414 = vunpack.c.l.b16 %v108
    %v415 = vunpack.c.h.b16 %v108
    %v416 = vunpack.c.l.b16 %v109
    %v417 = vunpack.c.h.b16 %v109
    %v418 = vunpack.c.l.b16 %v110
    %v419 = vunpack.c.h.b16 %v110
    %v420 = vunpack.c.l.b16 %v111
    %v421 = vunpack.c.h.b16 %v111
    %v422 = vunpack.c.l.b16 %v112
    %v423 = vunpack.c.h.b16 %v112
    %v424 = vunpack.c.l.b16 %v113
    %v425 = vunpack.c.h.b16 %v113
    %v426 = vunpack.c.l.b16 %v114
    %v427 = vunpack.c.h.b16 %v114
    %v428 = vunpack.c.l.b16 %v115
    %v429 = vunpack.c.h.b16 %v115
    %v430 = vunpack.c.l.b16 %v116
    %v431 = vunpack.c.h.b16 %v116
    %v432 = vunpack.c.l.b16 %v117
    %v433 = vunpack.c.h.b16 %v117
    %v434 = vunpack.c.l.b16 %v118
    %v435 = vunpack.c.h.b16 %v118
    %v436 = vunpack.c.l.b16 %v119
    %v437 = vunpack.c.h.b16 %v119
    %v438 = vunpack.c.l.b16 %v120
    %v439 = vunpack.c.h.b16 %v120
    %v440 = vunpack.c.l.b16 %v121
    %v441 = vunpack.c.h.b16 %v121
    %v442 = vunpack.c.l.b16 %v122
    %v443 = vunpack.c.h.b16 %v122
    %v444 = vunpack.c.l.b16 %v123
    %v445 = vunpack.c.h.b16 %v123
    %v446 = vunpack.c.l.b16 %v124
    %v447 = vunpack.c.h.b16 %v124
    %v448 = vunpack.c.l.b16 %v125
    %v449 = vunpack.c.h.b16 %v125
    %v450 = vunpack.c.l.b16 %v126
    %v451 = vunpack.c.h.b16 %v126
    %v452 = vunpack.c.l.b16 %v127
    %v453 = vunpack.c.h.b16 %v127
    %v454 = vunpack.c.l.b16 %v128
    %v455 = vunpack.c.h.b16 %v128
    %v456 = vunpack.c.l.b16 %v129
    %v457 = vunpack.c.h.b16 %v129
    %v458 = vunpack.c.l.b16 %v130
    %v459 = vunpack.c.h.b16 %v130
    %v460 = vunpack.c.l.b16 %v131
    %v461 = vunpack.c.h.b16 %v131
    %v462 = vunpack.c.l.b16 %v132
    %v463 = vunpack.c.h.b16 %v132
    %v464 = vunpack.c.l.b16 %v133
    %v465 = vunpack.c.h.b16 %v133
    %v466 = vunpack.c.l.b16 %v134
    %v467 = vunpack.c.h.b16 %v134
    %v468 = vunpack.c.l.b16 %v135
    %v469 = vunpack.c.h.b16 %v135
    %v470 = vunpack.c.l.b16 %v136
    %v471 = vunpack.c.h.b16 %v136
    %v472 = vunpack.c.l.b16 %v137
    %v473 = vunpack.c.h.b16 %v137
    %v474 = vunpack.c.l.b16 %v138
    %v475 = vunpack.c.h.b16 %v138
    %v476 = vunpack.c.l.b16 %v139
    %v477 = vunpack.c.h.b16 %v139
    %v478 = vunpack.c.l.b16 %v140
    %v479 = vunpack.c.h.b16 %v140
    %v480 = vunpack.c.l.b16 %v141
    %v481 = vunpack.c.h.b16 %v141
    %v482 = vunpack.c.l.b16 %v142
    %v483 = vunpack.c.h.b16 %v142
    %v484 = vunpack.c.l.b16 %v143
    %v485 = vunpack.c.h.b16 %v143
    %v486 = vunpack.c.l.b16 %v144
    %v487 = vunpack.c.h.b16 %v144
    %v488 = vunpack.c.l.b16 %v145
    %v489 = vunpack.c.h.b16 %v145
    %v490 = vunpack.c.l.b16 %v146
    %v491 = vunpack.c.h.b16 %v146
    %v492 = vunpack.c.l.b16 %v147
    %v493 = vunpack.c.h.b16 %v147
    %v494 = vunpack.c.l.b16 %v148
    %v495 = vunpack.c.h.b16 %v148
    %v496 = vunpack.c.l.b16 %v149
    %v497 = vunpack.c.h.b16 %v149
    %v498 = vunpack.c.l.b16 %v150
    %v499 = vunpack.c.h.b16 %v150
    %v500 = vunpack.c.l.b16 %v151
    %v501 = vunpack.c.h.b16 %v151
    %v502 = vunpack.c.l.b16 %v152
    %v503 = vunpack.c.h.b16 %v152
    %v504 = vunpack.c.l.b16 %v153
    %v505 = vunpack.c.h.b16 %v153
    %v506 = vunpack.c.l.b16 %v154
    %v507 = vunpack.c.h.b16 %v154
    %v508 = vunpack.c.l.b16 %v155
    %v509 = vunpack.c.h.b16 %v155
    %v510 = vunpack.c.l.b16 %v156
    %v511 = vunpack.c.h.b16 %v156
    %v512 = vunpack.c.l.b16 %v157
    %v513 = vunpack.c.h.b16 %v157
    %v514 = vunpack.c.l.b16 %v158
    %v515 = vunpack.c.h.b16 %v158
    %v516 = vunpack.c.l.b16 %v159
    %v517 = vunpack.c.h.b16 %v159
    %v518 = vunpack.c.l.b16 %v160
    %v519 = vunpack.c.h.b16 %v160
    %v520 = vunpack.c.l.b16 %v161
    %v521 = vunpack.c.h.b16 %v161
    %v522 = vunpack.c.l.b16 %v162
    %v523 = vunpack.c.h.b16 %v162
    %v524 = vunpack.c.l.b16 %v163
    %v525 = vunpack.c.h.b16 %v163
    %v526 = vunpack.c.l.b16 %v164
    %v527 = vunpack.c.h.b16 %v164
    %v528 = vunpack.c.l.b16 %v165
    %v529 = vunpack.c.h.b16 %v165
    %v530 = vunpack.c.l.b16 %v166
    %v531 = vunpack.c.h.b16 %v166
    %v532 = vunpack.c.l.b16 %v167
    %v533 = vunpack.c.h.b16 %v167
    %v534 = vunpack.c.l.b16 %v168
    %v535 = vunpack.c.h.b16 %v168
    %v536 = vunpack.c.l.b16 %v169
    %v537 = vunpack.c.h.b16 %v169
    %v538 = vunpack.c.l.b16 %v170
    %v539 = vunpack.c.h.b16 %v170
    %v540 = vunpack.c.l.b16 %v171
    %v541 = vunpack.c.h.b16 %v171
    %v542 = vunpack.c.l.b16 %v172
    %v543 = vunpack.c.h.b16 %v172
    %v544 = vunpack.c.l.b16 %v173
    %v545 = vunpack.c.h.b16 %v173
    %v546 = vunpack.c.l.b16 %v174
    %v547 = vunpack.c.h.b16 %v174
    %v548 = vunpack.c.l.b16 %v175
    %v549 = vunpack.c.h.b16 %v175
    %v550 = vunpack.c.l.b16 %v176
    %v551 = vunpack.c.h.b16 %v176
    %v552 = vunpack.c.l.b16 %v177
    %v553 = vunpack.c.h.b16 %v177
    %v554 = vunpack.c.l.b16 %v178
    %v555 = vunpack.c.h.b16 %v178
    %v556 = vunpack.c.l.b16 %v179
    %v557 = vunpack.c.h.b16 %v179
    %v558 = vunpack.c.l.b16 %v180
    %v559 = vunpack.c.h.b16 %v180
    %v560 = vunpack.c.l.b16 %v181
    %v561 = vunpack.c.h.b16 %v181
    %v562 = vunpack.c.l.b16 %v182
    %v563 = vunpack.c.h.b16 %v182
    %v564 = vunpack.c.l.b16 %v183
    %v565 = vunpack.c.h.b16 %v183
    %v566 = vunpack.c.l.b16 %v184
    %v567 = vunpack.c.h.b16 %v184
    %v568 = vunpack.c.l.b16 %v185
    %v569 = vunpack.c.h.b16 %v185
    %v570 = vunpack.c.l.b16 %v186
    %v571 = vunpack.c.h.b16 %v186
    %v572 = vunpack.c.l.b16 %v187
    %v573 = vunpack.c.h.b16 %v187
    %v574 = vunpack.c.l.b16 %v188
    %v575 = vunpack.c.h.b16 %v188
    %v576 = vunpack.c.l.b16 %v189
    %v577 = vunpack.c.h.b16 %v189
    %v578 = vunpack.c.l.b16 %v190
    %v579 = vunpack.c.h.b16 %v190
    %v580 = vunpack.c.l.b16 %v191
    %v581 = vunpack.c.h.b16 %v191
    %v582 = vunpack.c.l.b16 %v192
    %v583 = vunpack.c.h.b16 %v192
    %v584 = vunpack.c.l.b16 %v193
    %v585 = vunpack.c.h.b16 %v193
    %v586 = vunpack.c.l.b16 %v194
    %v587 = vunpack.c.h.b16 %v194
    %v588 = vunpack.c.l.b16 %v195
    %v589 = vunpack.c.h.b16 %v195
    %v590 = vunpack.c.l.b16 %v196
    %v591 = vunpack.c.h.b16 %v196
    %v592 = vunpack.c.l.b16 %v197
    %v593 = vunpack.c.h.b16 %v197
    %v594 = vunpack.c.l.b16 %v198
    %v595 = vunpack.c.h.b16 %v198
    %v596 = vunpack.c.l.b16 %v199
    %v597 = vunpack.c.h.b16 %v199
    %v598 = vunpack.c.l.b16 %v200
    %v599 = vunpack.c.h.b16 %v200
    %v600 = vunpack.c.l.b16 %v201
    %v601 = vunpack.c.h.b16 %v201
    %v602 = vunpack.c.l.b16 %v202
    %v603 = vunpack.c.h.b16 %v202
    %v604 = vunpack.c.l.b16 %v203
    %v605 = vunpack.c.h.b16 %v203
    %v606 = vunpack.c.l.b16 %v204
    %v607 = vunpack.c.h.b16 %v204
    %v608 = vunpack.c.l.b16 %v205
    %v609 = vunpack.c.h.b16 %v205
    %v610 = vunpack.c.l.b16 %v206
    %v611 = vunpack.c.h.b16 %v206
    %v612 = vunpack.c.l.b16 %v207
    %v613 = vunpack.c.h.b16 %v207
    %v614 = vunpack.c.l.b16 %v208
    %v615 = vunpack.c.h.b16 %v208
    %v616 = vunpack.c.l.b16 %v209
    %v617 = vunpack.c.h.b16 %v209
    %v618 = vunpack.c.l.b16 %v210
    %v619 = vunpack.c.h.b16 %v210
    %v620 = vunpack.c.l.b16 %v211
    %v621 = vunpack.c.h.b16 %v211
    %v622 = vunpack.c.l.b16 %v212
    %v623 = vunpack.c.h.b16 %v212
    %v624 = vunpack.c.l.b16 %v213
    %v625 = vunpack.c.h.b16 %v213
    %v626 = vunpack.c.l.b16 %v214
    %v627 = vunpack.c.h.b16 %v214
    %v628 = vunpack.c.l.b16 %v215
    %v629 = vunpack.c.h.b16 %v215
    %v630 = vunpack.c.l.b16 %v216
    %v631 = vunpack.c.h.b16 %v216
    %v632 = vunpack.c.l.b16 %v217
    %v633 = vunpack.c.h.b16 %v217
    %v634 = vunpack.c.l.b16 %v218
    %v635 = vunpack.c.h.b16 %v218
    %v636 = vunpack.c.l.b16 %v219
    %v637 = vunpack.c.h.b16 %v219
    %v638 = vunpack.c.l.b16 %v220
    %v639 = vunpack.c.h.b16 %v220
    %v640 = vunpack.c.l.b16 %v221
    %v641 = vunpack.c.h.b16 %v221
    %v642 = vunpack.c.l.b16 %v222
    %v643 = vunpack.c.h.b16 %v222
    %v644 = vunpack.c.l.b16 %v223
    %v645 = vunpack.c.h.b16 %v223
    %v646 = vunpack.c.l.b16 %v224
    %v647 = vunpack.c.h.b16 %v224
    %v648 = vunpack.c.l.b16 %v225
    %v649 = vunpack.c.h.b16 %v225
    %v650 = vunpack.c.l.b16 %v226
    %v651 = vunpack.c.h.b16 %v226
    %v652 = vunpack.c.l.b16 %v227
    %v653 = vunpack.c.h.b16 %v227
    %v654 = vpack.c.b16 %v406, %v398
    %v655 = vpack.c.b16 %v407, %v399
    %v656 = vpack.c.b16 %v408, %v400
    %v657 = vpack.c.b16 %v409, %v401
    %v658 = vpack.c.b16 %v410, %v402
    %v659 = vpack.c.b16 %v411, %v403
    %v660 = vpack.c.b16 %v412, %v404
    %v661 = vpack.c.b16 %v413, %v405
    %v662 = vpack.c.b16 %v422, %v414
    %v663 = vpack.c.b16 %v423, %v415
    %v664 = vpack.c.b16 %v424, %v416
    %v665 = vpack.c.b16 %v425, %v417
    %v666 = vpack.c.b16 %v426, %v418
    %v667 = vpack.c.b16 %v427, %v419
    %v668 = vpack.c.b16 %v428, %v420
    %v669 = vpack.c.b16 %v429, %v421
    %v670 = vpack.c.b16 %v438, %v430
    %v671 = vpack.c.b16 %v439, %v431
    %v672 = vpack.c.b16 %v440, %v432
    %v673 = vpack.c.b16 %v441, %v433
    %v674 = vpack.c.b16 %v442, %v434
    %v675 = vpack.c.b16 %v443, %v435
    %v676 = vpack.c.b16 %v444, %v436
    %v677 = vpack.c.b16 %v445, %v437
    %v678 = vpack.c.b16 %v454, %v446
    %v679 = vpack.c.b16 %v455, %v447
    %v680 = vpack.c.b16 %v456, %v448
    %v681 = vpack.c.b16 %v457, %v449
    %v682 = vpack.c.b16 %v458, %v450
    %v683 = vpack.c.b16 %v459, %v451
    %v684 = vpack.c.b16 %v460, %v452
    %v685 = vpack.c.b16 %v461, %v453
    %v686 = vpack.c.b16 %v470, %v462
    %v687 = vpack.c.b16 %v471, %v463
    %v688 = vpack.c.b16 %v472, %v464
    %v689 = vpack.c.b16 %v473, %v465
    %v690 = vpack.c.b16 %v474, %v466
    %v691 = vpack.c.b16 %v475, %v467
    %v692 = vpack.c.b16 %v476, %v468
    %v693 = vpack.c.b16 %v477, %v469
    %v694 = vpack.c.b16 %v486, %v478
    %v695 = vpack.c.b16 %v487, %v479
    %v696 = vpack.c.b16 %v488, %v480
    %v697 = vpack.c.b16 %v489, %v481
    %v698 = vpack.c.b16 %v490, %v482
    %v699 = vpack.c.b16 %v491, %v483
    %v700 = vpack.c.b16 %v492, %v484
    %v701 = vpack.c.b16 %v493, %v485
    %v702 = vpack.c.b16 %v502, %v494
    %v703 = vpack.c.b16 %v503, %v495
    %v704 = vpack.c.b16 %v504, %v496
    %v705 = vpack.c.b16 %v505, %v497
    %v706 = vpack.c.b16 %v506, %v498
    %v707 = vpack.c.b16 %v507, %v499
    %v708 = vpack.c.b16 %v508, %v500
    %v709 = vpack.c.b16 %v509, %v501
    %v710 = vpack.c.b16 %v518, %v510
    %v711 = vpack.c.b16 %v519, %v511
    %v712 = vpack.c.b16 %v520, %v512
    %v713 = vpack.c.b16 %v521, %v513
    %v714 = vpack.c.b16 %v522, %v514
    %v715 = vpack.c.b16 %v523, %v515
    %v716 = vpack.c.b16 %v524, %v516
    %v717 = vpack.c.b16 %v525, %v517
    %v718 = vpack.c.b16 %v534, %v526
    %v719 = vpack.c.b16 %v535, %v527
    %v720 = vpack.c.b16 %v536, %v528
    %v721 = vpack.c.b16 %v537, %v529
    %v722 = vpack.c.b16 %v538, %v530
    %v723 = vpack.c.b16 %v539, %v531
    %v724 = vpack.c.b16 %v540, %v532
    %v725 = vpack.c.b16 %v541, %v533
    %v726 = vpack.c.b16 %v550, %v542
    %v727 = vpack.c.b16 %v551, %v543
    %v728 = vpack.c.b16 %v552, %v544
    %v729 = vpack.c.b16 %v553, %v545
    %v730 = vpack.c.b16 %v554, %v546
    %v731 = vpack.c.b16 %v555, %v547
    %v732 = vpack.c.b16 %v556, %v548
    %v733 = vpack.c.b16 %v557, %v549
    %v734 = vpack.c.b16 %v566, %v558
    %v735 = vpack.c.b16 %v567, %v559
    %v736 = vpack.c.b16 %v568, %v560
    %v737 = vpack.c.b16 %v569, %v561
    %v738 = vpack.c.b16 %v570, %v562
    %v739 = vpack.c.b16 %v571, %v563
    %v740 = vpack.c.b16 %v572, %v564
    %v741 = vpack.c.b16 %v573, %v565
    %v742 = vpack.c.b16 %v582, %v574
    %v743 = vpack.c.b16 %v583, %v575
    %v744 = vpack.c.b16 %v584, %v576
    %v745 = vpack.c.b16 %v585, %v577
    %v746 = vpack.c.b16 %v586, %v578
    %v747 = vpack.c.b16 %v587, %v579
    %v748 = vpack.c.b16 %v588, %v580
    %v749 = vpack.c.b16 %v589, %v581
    %v750 = vpack.c.b16 %v598, %v590
    %v751 = vpack.c.b16 %v599, %v591
    %v752 = vpack.c.b16 %v600, %v592
    %v753 = vpack.c.b16 %v601, %v593
    %v754 = vpack.c.b16 %v602, %v594
    %v755 = vpack.c.b16 %v603, %v595
    %v756 = vpack.c.b16 %v604, %v596
    %v757 = vpack.c.b16 %v605, %v597
    %v758 = vpack.c.b16 %v614, %v606
    %v759 = vpack.c.b16 %v615, %v607
    %v760 = vpack.c.b16 %v616, %v608
    %v761 = vpack.c.b16 %v617, %v609
    %v762 = vpack.c.b16 %v618, %v610
    %v763 = vpack.c.b16 %v619, %v611
    %v764 = vpack.c.b16 %v620, %v612
    %v765 = vpack.c.b16 %v621, %v613
    %v766 = vpack.c.b16 %v630, %v622
    %v767 = vpack.c.b16 %v631, %v623
    %v768 = vpack.c.b16 %v632, %v624
    %v769 = vpack.c.b16 %v633, %v625
    %v770 = vpack.c.b16 %v634, %v626
    %v771 = vpack.c.b16 %v635, %v627
    %v772 = vpack.c.b16 %v636, %v628
    %v773 = vpack.c.b16 %v637, %v629
    %v774 = vpack.c.b16 %v646, %v638
    %v775 = vpack.c.b16 %v647, %v639
    %v776 = vpack.c.b16 %v648, %v640
    %v777 = vpack.c.b16 %v649, %v641
    %v778 = vpack.c.b16 %v650, %v642
    %v779 = vpack.c.b16 %v651, %v643
    %v780 = vpack.c.b16 %v652, %v644
    %v781 = vpack.c.b16 %v653, %v645
    %910 = vmatprep.subr.bf16.mxu0 %v655
    %911 = vmatpush1.bf16.msra.mxu0 %v654
    %912 = vmatprep.subr.bf16.mxu0 %v663
    %913 = vmatpush1.bf16.msra.mxu0 %v662
    %914 = vmatprep.subr.bf16.mxu0 %v671
    %915 = vmatpush1.bf16.msra.mxu0 %v670
    %916 = vmatprep.subr.bf16.mxu0 %v679
    %917 = vmatpush1.bf16.msra.mxu0 %v678
    %918 = vmatprep.subr.bf16.mxu0 %v687
    %919 = vmatpush1.bf16.msra.mxu0 %v686
    %920 = vmatprep.subr.bf16.mxu0 %v695
    %921 = vmatpush1.bf16.msra.mxu0 %v694
    %922 = vmatprep.subr.bf16.mxu0 %v703
    %923 = vmatpush1.bf16.msra.mxu0 %v702
    %924 = vmatprep.subr.bf16.mxu0 %v711
    %925 = vmatpush1.bf16.msra.mxu0 %v710
    %926 = vmatprep.subr.bf16.mxu0 %v719
    %927 = vmatpush1.bf16.msra.mxu0 %v718
    %928 = vmatprep.subr.bf16.mxu0 %v727
    %929 = vmatpush1.bf16.msra.mxu0 %v726
    %930 = vmatprep.subr.bf16.mxu0 %v735
    %931 = vmatpush1.bf16.msra.mxu0 %v734
    %932 = vmatprep.subr.bf16.mxu0 %v743
    %933 = vmatpush1.bf16.msra.mxu0 %v742
    %934 = vmatprep.subr.bf16.mxu0 %v751
    %935 = vmatpush1.bf16.msra.mxu0 %v750
    %936 = vmatprep.subr.bf16.mxu0 %v759
    %937 = vmatpush1.bf16.msra.mxu0 %v758
    %938 = vmatprep.subr.bf16.mxu0 %v767
    %939 = vmatpush1.bf16.msra.mxu0 %v766
    %940 = vmatprep.subr.bf16.mxu0 %v775
    %941 = vmatpush1.bf16.msra.mxu0 %v774
    %942 = vmatprep.mubr.bf16.mxu0 %v99
    %943 = vmatmul.mubr.bf16.gmra.mrb[0].mxu0 %v98
    %v944 = vpop.f32.mrb[0].mxu0
    %v945 = vadd.f32 %v233, %v944
    %v946 = vpop.f32.mrb[0].mxu0
    %v947 = vadd.f32 %v237, %v946
    %v948 = vpop.f32.mrb[0].mxu0
    %v949 = vadd.f32 %v233, %v948
    %v950 = vpop.f32.mrb[0].mxu0
    %v951 = vadd.f32 %v237, %v950
    %952 = vdwg.mxu0
    %953 = vmatprep.subr.bf16.mxu0 %v657
    %954 = vmatpush1.bf16.msra.mxu0 %v656
    %955 = vmatprep.subr.bf16.mxu0 %v665
    %956 = vmatpush1.bf16.msra.mxu0 %v664
    %957 = vmatprep.subr.bf16.mxu0 %v673
    %958 = vmatpush1.bf16.msra.mxu0 %v672
    %959 = vmatprep.subr.bf16.mxu0 %v681
    %960 = vmatpush1.bf16.msra.mxu0 %v680
    %961 = vmatprep.subr.bf16.mxu0 %v689
    %962 = vmatpush1.bf16.msra.mxu0 %v688
    %963 = vmatprep.subr.bf16.mxu0 %v697
    %964 = vmatpush1.bf16.msra.mxu0 %v696
    %965 = vmatprep.subr.bf16.mxu0 %v705
    %966 = vmatpush1.bf16.msra.mxu0 %v704
    %967 = vmatprep.subr.bf16.mxu0 %v713
    %968 = vmatpush1.bf16.msra.mxu0 %v712
    %969 = vmatprep.subr.bf16.mxu0 %v721
    %970 = vmatpush1.bf16.msra.mxu0 %v720
    %971 = vmatprep.subr.bf16.mxu0 %v729
    %972 = vmatpush1.bf16.msra.mxu0 %v728
    %973 = vmatprep.subr.bf16.mxu0 %v737
    %974 = vmatpush1.bf16.msra.mxu0 %v736
    %975 = vmatprep.subr.bf16.mxu0 %v745
    %976 = vmatpush1.bf16.msra.mxu0 %v744
    %977 = vmatprep.subr.bf16.mxu0 %v753
    %978 = vmatpush1.bf16.msra.mxu0 %v752
    %979 = vmatprep.subr.bf16.mxu0 %v761
    %980 = vmatpush1.bf16.msra.mxu0 %v760
    %981 = vmatprep.subr.bf16.mxu0 %v769
    %982 = vmatpush1.bf16.msra.mxu0 %v768
    %983 = vmatprep.subr.bf16.mxu0 %v777
    %984 = vmatpush1.bf16.msra.mxu0 %v776
    %985 = vmatprep.mubr.bf16.mxu0 %v99
    %986 = vmatmul.mubr.bf16.gmra.mrb[0].mxu0 %v98
    %v987 = vpop.f32.mrb[0].mxu0
    %v988 = vadd.f32 %v241, %v987
    %v989 = vpop.f32.mrb[0].mxu0
    %v990 = vadd.f32 %v245, %v989
    %v991 = vpop.f32.mrb[0].mxu0
    %v992 = vadd.f32 %v241, %v991
    %v993 = vpop.f32.mrb[0].mxu0
    %v994 = vadd.f32 %v245, %v993
    %995 = vdwg.mxu0
    %996 = vmatprep.subr.bf16.mxu0 %v659
    %997 = vmatpush1.bf16.msra.mxu0 %v658
    %998 = vmatprep.subr.bf16.mxu0 %v667
    %999 = vmatpush1.bf16.msra.mxu0 %v666
    %1000 = vmatprep.subr.bf16.mxu0 %v675
    %1001 = vmatpush1.bf16.msra.mxu0 %v674
    %1002 = vmatprep.subr.bf16.mxu0 %v683
    %1003 = vmatpush1.bf16.msra.mxu0 %v682
    %1004 = vmatprep.subr.bf16.mxu0 %v691
    %1005 = vmatpush1.bf16.msra.mxu0 %v690
    %1006 = vmatprep.subr.bf16.mxu0 %v699
    %1007 = vmatpush1.bf16.msra.mxu0 %v698
    %1008 = vmatprep.subr.bf16.mxu0 %v707
    %1009 = vmatpush1.bf16.msra.mxu0 %v706
    %1010 = vmatprep.subr.bf16.mxu0 %v715
    %1011 = vmatpush1.bf16.msra.mxu0 %v714
    %1012 = vmatprep.subr.bf16.mxu0 %v723
    %1013 = vmatpush1.bf16.msra.mxu0 %v722
    %1014 = vmatprep.subr.bf16.mxu0 %v731
    %1015 = vmatpush1.bf16.msra.mxu0 %v730
    %1016 = vmatprep.subr.bf16.mxu0 %v739
    %1017 = vmatpush1.bf16.msra.mxu0 %v738
    %1018 = vmatprep.subr.bf16.mxu0 %v747
    %1019 = vmatpush1.bf16.msra.mxu0 %v746
    %1020 = vmatprep.subr.bf16.mxu0 %v755
    %1021 = vmatpush1.bf16.msra.mxu0 %v754
    %1022 = vmatprep.subr.bf16.mxu0 %v763
    %1023 = vmatpush1.bf16.msra.mxu0 %v762
    %1024 = vmatprep.subr.bf16.mxu0 %v771
    %1025 = vmatpush1.bf16.msra.mxu0 %v770
    %1026 = vmatprep.subr.bf16.mxu0 %v779
    %1027 = vmatpush1.bf16.msra.mxu0 %v778
    %1028 = vmatprep.mubr.bf16.mxu0 %v99
    %1029 = vmatmul.mubr.bf16.gmra.mrb[0].mxu0 %v98
    %v1030 = vpop.f32.mrb[0].mxu0
    %v1031 = vadd.f32 %v249, %v1030
    %v1032 = vpop.f32.mrb[0].mxu0
    %v1033 = vadd.f32 %v253, %v1032
    %v1034 = vpop.f32.mrb[0].mxu0
    %v1035 = vadd.f32 %v249, %v1034
    %v1036 = vpop.f32.mrb[0].mxu0
    %v1037 = vadd.f32 %v253, %v1036
    %1038 = vdwg.mxu0
    %1039 = vmatprep.subr.bf16.mxu0 %v661
    %1040 = vmatpush1.bf16.msra.mxu0 %v660
    %1041 = vmatprep.subr.bf16.mxu0 %v669
    %1042 = vmatpush1.bf16.msra.mxu0 %v668
    %1043 = vmatprep.subr.bf16.mxu0 %v677
    %1044 = vmatpush1.bf16.msra.mxu0 %v676
    %1045 = vmatprep.subr.bf16.mxu0 %v685
    %1046 = vmatpush1.bf16.msra.mxu0 %v684
    %1047 = vmatprep.subr.bf16.mxu0 %v693
    %1048 = vmatpush1.bf16.msra.mxu0 %v692
    %1049 = vmatprep.subr.bf16.mxu0 %v701
    %1050 = vmatpush1.bf16.msra.mxu0 %v700
    %1051 = vmatprep.subr.bf16.mxu0 %v709
    %1052 = vmatpush1.bf16.msra.mxu0 %v708
    %1053 = vmatprep.subr.bf16.mxu0 %v717
    %1054 = vmatpush1.bf16.msra.mxu0 %v716
    %1055 = vmatprep.subr.bf16.mxu0 %v725
    %1056 = vmatpush1.bf16.msra.mxu0 %v724
    %1057 = vmatprep.subr.bf16.mxu0 %v733
    %1058 = vmatpush1.bf16.msra.mxu0 %v732
    %1059 = vmatprep.subr.bf16.mxu0 %v741
    %1060 = vmatpush1.bf16.msra.mxu0 %v740
    %1061 = vmatprep.subr.bf16.mxu0 %v749
    %1062 = vmatpush1.bf16.msra.mxu0 %v748
    %1063 = vmatprep.subr.bf16.mxu0 %v757
    %1064 = vmatpush1.bf16.msra.mxu0 %v756
    %1065 = vmatprep.subr.bf16.mxu0 %v765
    %1066 = vmatpush1.bf16.msra.mxu0 %v764
    %1067 = vmatprep.subr.bf16.mxu0 %v773
    %1068 = vmatpush1.bf16.msra.mxu0 %v772
    %1069 = vmatprep.subr.bf16.mxu0 %v781
    %1070 = vmatpush1.bf16.msra.mxu0 %v780
    %1071 = vmatprep.mubr.bf16.mxu0 %v99
    %1072 = vmatmul.mubr.bf16.gmra.mrb[0].mxu0 %v98
    %v1073 = vpop.f32.mrb[0].mxu0
    %v1074 = vadd.f32 %v257, %v1073
    %v1075 = vpop.f32.mrb[0].mxu0
    %v1076 = vadd.f32 %v261, %v1075
    %v1077 = vpop.f32.mrb[0].mxu0
    %v1078 = vadd.f32 %v257, %v1077
    %v1079 = vpop.f32.mrb[0].mxu0
    %v1080 = vadd.f32 %v261, %v1079
    %1081 = vdwg.mxu0
    %v1082 = vmax.f32 %v945, 0.0
    %v1083 = vmax.f32 %v947, 0.0
    %v1084 = vmax.f32 %v988, 0.0
    %v1085 = vmax.f32 %v990, 0.0
    %v1086 = vmax.f32 %v1031, 0.0
    %v1087 = vmax.f32 %v1033, 0.0
    %v1088 = vmax.f32 %v1074, 0.0
    %v1089 = vmax.f32 %v1076, 0.0
    %v1090 = vmax.f32 %v949, 0.0
    %v1091 = vmax.f32 %v951, 0.0
    %v1092 = vmax.f32 %v992, 0.0
    %v1093 = vmax.f32 %v994, 0.0
    %v1094 = vmax.f32 %v1035, 0.0
    %v1095 = vmax.f32 %v1037, 0.0
    %v1096 = vmax.f32 %v1078, 0.0
    %v1097 = vmax.f32 %v1080, 0.0
    %v1098 = vpack.c.bf16 %v1090, %v1082
    %v1099 = vpack.c.bf16 %v1091, %v1083
    %v1100 = vpack.c.bf16 %v1092, %v1084
    %v1101 = vpack.c.bf16 %v1093, %v1085
    %v1102 = vpack.c.bf16 %v1094, %v1086
    %v1103 = vpack.c.bf16 %v1095, %v1087
    %v1104 = vpack.c.bf16 %v1096, %v1088
    %v1105 = vpack.c.bf16 %v1097, %v1089
    %v1106 = vld [vmem:[#allocation8] sm:$0xff]
    %v1107 = vld [vmem:[#allocation8 + $0x8] sm:$0xff]
    %v1108 = vld [vmem:[#allocation8 + $0x10] sm:$0xff]
    %v1109 = vld [vmem:[#allocation8 + $0x18] sm:$0xff]
    %v1110 = vld [vmem:[#allocation8 + $0x20] sm:$0xff]
    %v1111 = vld [vmem:[#allocation8 + $0x28] sm:$0xff]
    %v1112 = vld [vmem:[#allocation8 + $0x30] sm:$0xff]
    %v1113 = vld [vmem:[#allocation8 + $0x38] sm:$0xff]
    %v1114 = vld [vmem:[#allocation8 + $0x40] sm:$0xff]
    %v1115 = vld [vmem:[#allocation8 + $0x48] sm:$0xff]
    %v1116 = vld [vmem:[#allocation8 + $0x50] sm:$0xff]
    %v1117 = vld [vmem:[#allocation8 + $0x58] sm:$0xff]
    %v1118 = vld [vmem:[#allocation8 + $0x60] sm:$0xff]
    %v1119 = vld [vmem:[#allocation8 + $0x68] sm:$0xff]
    %v1120 = vld [vmem:[#allocation8 + $0x70] sm:$0xff]
    %v1121 = vld [vmem:[#allocation8 + $0x78] sm:$0xff]
    %v1122 = vld [vmem:[#allocation8 + $0x80] sm:$0xff]
    %v1123 = vld [vmem:[#allocation8 + $0x88] sm:$0xff]
    %v1124 = vld [vmem:[#allocation8 + $0x90] sm:$0xff]
    %v1125 = vld [vmem:[#allocation8 + $0x98] sm:$0xff]
    %v1126 = vld [vmem:[#allocation8 + $0xa0] sm:$0xff]
    %v1127 = vld [vmem:[#allocation8 + $0xa8] sm:$0xff]
    %v1128 = vld [vmem:[#allocation8 + $0xb0] sm:$0xff]
    %v1129 = vld [vmem:[#allocation8 + $0xb8] sm:$0xff]
    %v1130 = vld [vmem:[#allocation8 + $0xc0] sm:$0xff]
    %v1131 = vld [vmem:[#allocation8 + $0xc8] sm:$0xff]
    %v1132 = vld [vmem:[#allocation8 + $0xd0] sm:$0xff]
    %v1133 = vld [vmem:[#allocation8 + $0xd8] sm:$0xff]
    %v1134 = vld [vmem:[#allocation8 + $0xe0] sm:$0xff]
    %v1135 = vld [vmem:[#allocation8 + $0xe8] sm:$0xff]
    %v1136 = vld [vmem:[#allocation8 + $0xf0] sm:$0xff]
    %v1137 = vld [vmem:[#allocation8 + $0xf8] sm:$0xff]
    %v1138 = vld [vmem:[#allocation8 + $0x100] sm:$0xff]
    %v1139 = vld [vmem:[#allocation8 + $0x108] sm:$0xff]
    %v1140 = vld [vmem:[#allocation8 + $0x110] sm:$0xff]
    %v1141 = vld [vmem:[#allocation8 + $0x118] sm:$0xff]
    %v1142 = vld [vmem:[#allocation8 + $0x120] sm:$0xff]
    %v1143 = vld [vmem:[#allocation8 + $0x128] sm:$0xff]
    %v1144 = vld [vmem:[#allocation8 + $0x130] sm:$0xff]
    %v1145 = vld [vmem:[#allocation8 + $0x138] sm:$0xff]
    %v1146 = vld [vmem:[#allocation8 + $0x140] sm:$0xff]
    %v1147 = vld [vmem:[#allocation8 + $0x148] sm:$0xff]
    %v1148 = vld [vmem:[#allocation8 + $0x150] sm:$0xff]
    %v1149 = vld [vmem:[#allocation8 + $0x158] sm:$0xff]
    %v1150 = vld [vmem:[#allocation8 + $0x160] sm:$0xff]
    %v1151 = vld [vmem:[#allocation8 + $0x168] sm:$0xff]
    %v1152 = vld [vmem:[#allocation8 + $0x170] sm:$0xff]
    %v1153 = vld [vmem:[#allocation8 + $0x178] sm:$0xff]
    %v1154 = vld [vmem:[#allocation8 + $0x180] sm:$0xff]
    %v1155 = vld [vmem:[#allocation8 + $0x188] sm:$0xff]
    %v1156 = vld [vmem:[#allocation8 + $0x190] sm:$0xff]
    %v1157 = vld [vmem:[#allocation8 + $0x198] sm:$0xff]
    %v1158 = vld [vmem:[#allocation8 + $0x1a0] sm:$0xff]
    %v1159 = vld [vmem:[#allocation8 + $0x1a8] sm:$0xff]
    %v1160 = vld [vmem:[#allocation8 + $0x1b0] sm:$0xff]
    %v1161 = vld [vmem:[#allocation8 + $0x1b8] sm:$0xff]
    %v1162 = vld [vmem:[#allocation8 + $0x1c0] sm:$0xff]
    %v1163 = vld [vmem:[#allocation8 + $0x1c8] sm:$0xff]
    %v1164 = vld [vmem:[#allocation8 + $0x1d0] sm:$0xff]
    %v1165 = vld [vmem:[#allocation8 + $0x1d8] sm:$0xff]
    %v1166 = vld [vmem:[#allocation8 + $0x1e0] sm:$0xff]
    %v1167 = vld [vmem:[#allocation8 + $0x1e8] sm:$0xff]
    %v1168 = vld [vmem:[#allocation8 + $0x1f0] sm:$0xff]
    %v1169 = vld [vmem:[#allocation8 + $0x1f8] sm:$0xff]
    %v1170 = vld [vmem:[#allocation8 + $0x200] sm:$0xff]
    %v1171 = vld [vmem:[#allocation8 + $0x208] sm:$0xff]
    %v1172 = vld [vmem:[#allocation8 + $0x210] sm:$0xff]
    %v1173 = vld [vmem:[#allocation8 + $0x218] sm:$0xff]
    %v1174 = vld [vmem:[#allocation8 + $0x220] sm:$0xff]
    %v1175 = vld [vmem:[#allocation8 + $0x228] sm:$0xff]
    %v1176 = vld [vmem:[#allocation8 + $0x230] sm:$0xff]
    %v1177 = vld [vmem:[#allocation8 + $0x238] sm:$0xff]
    %v1178 = vld [vmem:[#allocation8 + $0x240] sm:$0xff]
    %v1179 = vld [vmem:[#allocation8 + $0x248] sm:$0xff]
    %v1180 = vld [vmem:[#allocation8 + $0x250] sm:$0xff]
    %v1181 = vld [vmem:[#allocation8 + $0x258] sm:$0xff]
    %v1182 = vld [vmem:[#allocation8 + $0x260] sm:$0xff]
    %v1183 = vld [vmem:[#allocation8 + $0x268] sm:$0xff]
    %v1184 = vld [vmem:[#allocation8 + $0x270] sm:$0xff]
    %v1185 = vld [vmem:[#allocation8 + $0x278] sm:$0xff]
    %v1186 = vld [vmem:[#allocation8 + $0x280] sm:$0xff]
    %v1187 = vld [vmem:[#allocation8 + $0x288] sm:$0xff]
    %v1188 = vld [vmem:[#allocation8 + $0x290] sm:$0xff]
    %v1189 = vld [vmem:[#allocation8 + $0x298] sm:$0xff]
    %v1190 = vld [vmem:[#allocation8 + $0x2a0] sm:$0xff]
    %v1191 = vld [vmem:[#allocation8 + $0x2a8] sm:$0xff]
    %v1192 = vld [vmem:[#allocation8 + $0x2b0] sm:$0xff]
    %v1193 = vld [vmem:[#allocation8 + $0x2b8] sm:$0xff]
    %v1194 = vld [vmem:[#allocation8 + $0x2c0] sm:$0xff]
    %v1195 = vld [vmem:[#allocation8 + $0x2c8] sm:$0xff]
    %v1196 = vld [vmem:[#allocation8 + $0x2d0] sm:$0xff]
    %v1197 = vld [vmem:[#allocation8 + $0x2d8] sm:$0xff]
    %v1198 = vld [vmem:[#allocation8 + $0x2e0] sm:$0xff]
    %v1199 = vld [vmem:[#allocation8 + $0x2e8] sm:$0xff]
    %v1200 = vld [vmem:[#allocation8 + $0x2f0] sm:$0xff]
    %v1201 = vld [vmem:[#allocation8 + $0x2f8] sm:$0xff]
    %v1202 = vld [vmem:[#allocation8 + $0x300] sm:$0xff]
    %v1203 = vld [vmem:[#allocation8 + $0x308] sm:$0xff]
    %v1204 = vld [vmem:[#allocation8 + $0x310] sm:$0xff]
    %v1205 = vld [vmem:[#allocation8 + $0x318] sm:$0xff]
    %v1206 = vld [vmem:[#allocation8 + $0x320] sm:$0xff]
    %v1207 = vld [vmem:[#allocation8 + $0x328] sm:$0xff]
    %v1208 = vld [vmem:[#allocation8 + $0x330] sm:$0xff]
    %v1209 = vld [vmem:[#allocation8 + $0x338] sm:$0xff]
    %v1210 = vld [vmem:[#allocation8 + $0x340] sm:$0xff]
    %v1211 = vld [vmem:[#allocation8 + $0x348] sm:$0xff]
    %v1212 = vld [vmem:[#allocation8 + $0x350] sm:$0xff]
    %v1213 = vld [vmem:[#allocation8 + $0x358] sm:$0xff]
    %v1214 = vld [vmem:[#allocation8 + $0x360] sm:$0xff]
    %v1215 = vld [vmem:[#allocation8 + $0x368] sm:$0xff]
    %v1216 = vld [vmem:[#allocation8 + $0x370] sm:$0xff]
    %v1217 = vld [vmem:[#allocation8 + $0x378] sm:$0xff]
    %v1218 = vld [vmem:[#allocation8 + $0x380] sm:$0xff]
    %v1219 = vld [vmem:[#allocation8 + $0x388] sm:$0xff]
    %v1220 = vld [vmem:[#allocation8 + $0x390] sm:$0xff]
    %v1221 = vld [vmem:[#allocation8 + $0x398] sm:$0xff]
    %v1222 = vld [vmem:[#allocation8 + $0x3a0] sm:$0xff]
    %v1223 = vld [vmem:[#allocation8 + $0x3a8] sm:$0xff]
    %v1224 = vld [vmem:[#allocation8 + $0x3b0] sm:$0xff]
    %v1225 = vld [vmem:[#allocation8 + $0x3b8] sm:$0xff]
    %v1226 = vld [vmem:[#allocation8 + $0x3c0] sm:$0xff]
    %v1227 = vld [vmem:[#allocation8 + $0x3c8] sm:$0xff]
    %v1228 = vld [vmem:[#allocation8 + $0x3d0] sm:$0xff]
    %v1229 = vld [vmem:[#allocation8 + $0x3d8] sm:$0xff]
    %v1230 = vld [vmem:[#allocation8 + $0x3e0] sm:$0xff]
    %v1231 = vld [vmem:[#allocation8 + $0x3e8] sm:$0xff]
    %v1232 = vld [vmem:[#allocation8 + $0x3f0] sm:$0xff]
    %v1233 = vld [vmem:[#allocation8 + $0x3f8] sm:$0xff]
    %v1234 = vld [vmem:[%s4] sm:$0x3]
    %v1236 = vlaneseq
    %v1237 = vshrl.u32 %v1236, 7
    %v1238 = vsub.s32 0, %v1237
    %v1239 = vrot.slane %v1234, %v1238
    %v1240 = vlaneseq
    %v1241 = vshrl.u32 %v1240, 7
    %v1242 = vsub.s32 1, %v1241
    %v1243 = vrot.slane %v1234, %v1242
    %v1374 = vunpack.c.l.b16 %v1106
    %v1375 = vunpack.c.h.b16 %v1106
    %v1376 = vunpack.c.l.b16 %v1107
    %v1377 = vunpack.c.h.b16 %v1107
    %v1378 = vunpack.c.l.b16 %v1108
    %v1379 = vunpack.c.h.b16 %v1108
    %v1380 = vunpack.c.l.b16 %v1109
    %v1381 = vunpack.c.h.b16 %v1109
    %v1382 = vunpack.c.l.b16 %v1110
    %v1383 = vunpack.c.h.b16 %v1110
    %v1384 = vunpack.c.l.b16 %v1111
    %v1385 = vunpack.c.h.b16 %v1111
    %v1386 = vunpack.c.l.b16 %v1112
    %v1387 = vunpack.c.h.b16 %v1112
    %v1388 = vunpack.c.l.b16 %v1113
    %v1389 = vunpack.c.h.b16 %v1113
    %v1390 = vunpack.c.l.b16 %v1114
    %v1391 = vunpack.c.h.b16 %v1114
    %v1392 = vunpack.c.l.b16 %v1115
    %v1393 = vunpack.c.h.b16 %v1115
    %v1394 = vunpack.c.l.b16 %v1116
    %v1395 = vunpack.c.h.b16 %v1116
    %v1396 = vunpack.c.l.b16 %v1117
    %v1397 = vunpack.c.h.b16 %v1117
    %v1398 = vunpack.c.l.b16 %v1118
    %v1399 = vunpack.c.h.b16 %v1118
    %v1400 = vunpack.c.l.b16 %v1119
    %v1401 = vunpack.c.h.b16 %v1119
    %v1402 = vunpack.c.l.b16 %v1120
    %v1403 = vunpack.c.h.b16 %v1120
    %v1404 = vunpack.c.l.b16 %v1121
    %v1405 = vunpack.c.h.b16 %v1121
    %v1406 = vunpack.c.l.b16 %v1122
    %v1407 = vunpack.c.h.b16 %v1122
    %v1408 = vunpack.c.l.b16 %v1123
    %v1409 = vunpack.c.h.b16 %v1123
    %v1410 = vunpack.c.l.b16 %v1124
    %v1411 = vunpack.c.h.b16 %v1124
    %v1412 = vunpack.c.l.b16 %v1125
    %v1413 = vunpack.c.h.b16 %v1125
    %v1414 = vunpack.c.l.b16 %v1126
    %v1415 = vunpack.c.h.b16 %v1126
    %v1416 = vunpack.c.l.b16 %v1127
    %v1417 = vunpack.c.h.b16 %v1127
    %v1418 = vunpack.c.l.b16 %v1128
    %v1419 = vunpack.c.h.b16 %v1128
    %v1420 = vunpack.c.l.b16 %v1129
    %v1421 = vunpack.c.h.b16 %v1129
    %v1422 = vunpack.c.l.b16 %v1130
    %v1423 = vunpack.c.h.b16 %v1130
    %v1424 = vunpack.c.l.b16 %v1131
    %v1425 = vunpack.c.h.b16 %v1131
    %v1426 = vunpack.c.l.b16 %v1132
    %v1427 = vunpack.c.h.b16 %v1132
    %v1428 = vunpack.c.l.b16 %v1133
    %v1429 = vunpack.c.h.b16 %v1133
    %v1430 = vunpack.c.l.b16 %v1134
    %v1431 = vunpack.c.h.b16 %v1134
    %v1432 = vunpack.c.l.b16 %v1135
    %v1433 = vunpack.c.h.b16 %v1135
    %v1434 = vunpack.c.l.b16 %v1136
    %v1435 = vunpack.c.h.b16 %v1136
    %v1436 = vunpack.c.l.b16 %v1137
    %v1437 = vunpack.c.h.b16 %v1137
    %v1438 = vunpack.c.l.b16 %v1138
    %v1439 = vunpack.c.h.b16 %v1138
    %v1440 = vunpack.c.l.b16 %v1139
    %v1441 = vunpack.c.h.b16 %v1139
    %v1442 = vunpack.c.l.b16 %v1140
    %v1443 = vunpack.c.h.b16 %v1140
    %v1444 = vunpack.c.l.b16 %v1141
    %v1445 = vunpack.c.h.b16 %v1141
    %v1446 = vunpack.c.l.b16 %v1142
    %v1447 = vunpack.c.h.b16 %v1142
    %v1448 = vunpack.c.l.b16 %v1143
    %v1449 = vunpack.c.h.b16 %v1143
    %v1450 = vunpack.c.l.b16 %v1144
    %v1451 = vunpack.c.h.b16 %v1144
    %v1452 = vunpack.c.l.b16 %v1145
    %v1453 = vunpack.c.h.b16 %v1145
    %v1454 = vunpack.c.l.b16 %v1146
    %v1455 = vunpack.c.h.b16 %v1146
    %v1456 = vunpack.c.l.b16 %v1147
    %v1457 = vunpack.c.h.b16 %v1147
    %v1458 = vunpack.c.l.b16 %v1148
    %v1459 = vunpack.c.h.b16 %v1148
    %v1460 = vunpack.c.l.b16 %v1149
    %v1461 = vunpack.c.h.b16 %v1149
    %v1462 = vunpack.c.l.b16 %v1150
    %v1463 = vunpack.c.h.b16 %v1150
    %v1464 = vunpack.c.l.b16 %v1151
    %v1465 = vunpack.c.h.b16 %v1151
    %v1466 = vunpack.c.l.b16 %v1152
    %v1467 = vunpack.c.h.b16 %v1152
    %v1468 = vunpack.c.l.b16 %v1153
    %v1469 = vunpack.c.h.b16 %v1153
    %v1470 = vunpack.c.l.b16 %v1154
    %v1471 = vunpack.c.h.b16 %v1154
    %v1472 = vunpack.c.l.b16 %v1155
    %v1473 = vunpack.c.h.b16 %v1155
    %v1474 = vunpack.c.l.b16 %v1156
    %v1475 = vunpack.c.h.b16 %v1156
    %v1476 = vunpack.c.l.b16 %v1157
    %v1477 = vunpack.c.h.b16 %v1157
    %v1478 = vunpack.c.l.b16 %v1158
    %v1479 = vunpack.c.h.b16 %v1158
    %v1480 = vunpack.c.l.b16 %v1159
    %v1481 = vunpack.c.h.b16 %v1159
    %v1482 = vunpack.c.l.b16 %v1160
    %v1483 = vunpack.c.h.b16 %v1160
    %v1484 = vunpack.c.l.b16 %v1161
    %v1485 = vunpack.c.h.b16 %v1161
    %v1486 = vunpack.c.l.b16 %v1162
    %v1487 = vunpack.c.h.b16 %v1162
    %v1488 = vunpack.c.l.b16 %v1163
    %v1489 = vunpack.c.h.b16 %v1163
    %v1490 = vunpack.c.l.b16 %v1164
    %v1491 = vunpack.c.h.b16 %v1164
    %v1492 = vunpack.c.l.b16 %v1165
    %v1493 = vunpack.c.h.b16 %v1165
    %v1494 = vunpack.c.l.b16 %v1166
    %v1495 = vunpack.c.h.b16 %v1166
    %v1496 = vunpack.c.l.b16 %v1167
    %v1497 = vunpack.c.h.b16 %v1167
    %v1498 = vunpack.c.l.b16 %v1168
    %v1499 = vunpack.c.h.b16 %v1168
    %v1500 = vunpack.c.l.b16 %v1169
    %v1501 = vunpack.c.h.b16 %v1169
    %v1502 = vunpack.c.l.b16 %v1170
    %v1503 = vunpack.c.h.b16 %v1170
    %v1504 = vunpack.c.l.b16 %v1171
    %v1505 = vunpack.c.h.b16 %v1171
    %v1506 = vunpack.c.l.b16 %v1172
    %v1507 = vunpack.c.h.b16 %v1172
    %v1508 = vunpack.c.l.b16 %v1173
    %v1509 = vunpack.c.h.b16 %v1173
    %v1510 = vunpack.c.l.b16 %v1174
    %v1511 = vunpack.c.h.b16 %v1174
    %v1512 = vunpack.c.l.b16 %v1175
    %v1513 = vunpack.c.h.b16 %v1175
    %v1514 = vunpack.c.l.b16 %v1176
    %v1515 = vunpack.c.h.b16 %v1176
    %v1516 = vunpack.c.l.b16 %v1177
    %v1517 = vunpack.c.h.b16 %v1177
    %v1518 = vunpack.c.l.b16 %v1178
    %v1519 = vunpack.c.h.b16 %v1178
    %v1520 = vunpack.c.l.b16 %v1179
    %v1521 = vunpack.c.h.b16 %v1179
    %v1522 = vunpack.c.l.b16 %v1180
    %v1523 = vunpack.c.h.b16 %v1180
    %v1524 = vunpack.c.l.b16 %v1181
    %v1525 = vunpack.c.h.b16 %v1181
    %v1526 = vunpack.c.l.b16 %v1182
    %v1527 = vunpack.c.h.b16 %v1182
    %v1528 = vunpack.c.l.b16 %v1183
    %v1529 = vunpack.c.h.b16 %v1183
    %v1530 = vunpack.c.l.b16 %v1184
    %v1531 = vunpack.c.h.b16 %v1184
    %v1532 = vunpack.c.l.b16 %v1185
    %v1533 = vunpack.c.h.b16 %v1185
    %v1534 = vunpack.c.l.b16 %v1186
    %v1535 = vunpack.c.h.b16 %v1186
    %v1536 = vunpack.c.l.b16 %v1187
    %v1537 = vunpack.c.h.b16 %v1187
    %v1538 = vunpack.c.l.b16 %v1188
    %v1539 = vunpack.c.h.b16 %v1188
    %v1540 = vunpack.c.l.b16 %v1189
    %v1541 = vunpack.c.h.b16 %v1189
    %v1542 = vunpack.c.l.b16 %v1190
    %v1543 = vunpack.c.h.b16 %v1190
    %v1544 = vunpack.c.l.b16 %v1191
    %v1545 = vunpack.c.h.b16 %v1191
    %v1546 = vunpack.c.l.b16 %v1192
    %v1547 = vunpack.c.h.b16 %v1192
    %v1548 = vunpack.c.l.b16 %v1193
    %v1549 = vunpack.c.h.b16 %v1193
    %v1550 = vunpack.c.l.b16 %v1194
    %v1551 = vunpack.c.h.b16 %v1194
    %v1552 = vunpack.c.l.b16 %v1195
    %v1553 = vunpack.c.h.b16 %v1195
    %v1554 = vunpack.c.l.b16 %v1196
    %v1555 = vunpack.c.h.b16 %v1196
    %v1556 = vunpack.c.l.b16 %v1197
    %v1557 = vunpack.c.h.b16 %v1197
    %v1558 = vunpack.c.l.b16 %v1198
    %v1559 = vunpack.c.h.b16 %v1198
    %v1560 = vunpack.c.l.b16 %v1199
    %v1561 = vunpack.c.h.b16 %v1199
    %v1562 = vunpack.c.l.b16 %v1200
    %v1563 = vunpack.c.h.b16 %v1200
    %v1564 = vunpack.c.l.b16 %v1201
    %v1565 = vunpack.c.h.b16 %v1201
    %v1566 = vunpack.c.l.b16 %v1202
    %v1567 = vunpack.c.h.b16 %v1202
    %v1568 = vunpack.c.l.b16 %v1203
    %v1569 = vunpack.c.h.b16 %v1203
    %v1570 = vunpack.c.l.b16 %v1204
    %v1571 = vunpack.c.h.b16 %v1204
    %v1572 = vunpack.c.l.b16 %v1205
    %v1573 = vunpack.c.h.b16 %v1205
    %v1574 = vunpack.c.l.b16 %v1206
    %v1575 = vunpack.c.h.b16 %v1206
    %v1576 = vunpack.c.l.b16 %v1207
    %v1577 = vunpack.c.h.b16 %v1207
    %v1578 = vunpack.c.l.b16 %v1208
    %v1579 = vunpack.c.h.b16 %v1208
    %v1580 = vunpack.c.l.b16 %v1209
    %v1581 = vunpack.c.h.b16 %v1209
    %v1582 = vunpack.c.l.b16 %v1210
    %v1583 = vunpack.c.h.b16 %v1210
    %v1584 = vunpack.c.l.b16 %v1211
    %v1585 = vunpack.c.h.b16 %v1211
    %v1586 = vunpack.c.l.b16 %v1212
    %v1587 = vunpack.c.h.b16 %v1212
    %v1588 = vunpack.c.l.b16 %v1213
    %v1589 = vunpack.c.h.b16 %v1213
    %v1590 = vunpack.c.l.b16 %v1214
    %v1591 = vunpack.c.h.b16 %v1214
    %v1592 = vunpack.c.l.b16 %v1215
    %v1593 = vunpack.c.h.b16 %v1215
    %v1594 = vunpack.c.l.b16 %v1216
    %v1595 = vunpack.c.h.b16 %v1216
    %v1596 = vunpack.c.l.b16 %v1217
    %v1597 = vunpack.c.h.b16 %v1217
    %v1598 = vunpack.c.l.b16 %v1218
    %v1599 = vunpack.c.h.b16 %v1218
    %v1600 = vunpack.c.l.b16 %v1219
    %v1601 = vunpack.c.h.b16 %v1219
    %v1602 = vunpack.c.l.b16 %v1220
    %v1603 = vunpack.c.h.b16 %v1220
    %v1604 = vunpack.c.l.b16 %v1221
    %v1605 = vunpack.c.h.b16 %v1221
    %v1606 = vunpack.c.l.b16 %v1222
    %v1607 = vunpack.c.h.b16 %v1222
    %v1608 = vunpack.c.l.b16 %v1223
    %v1609 = vunpack.c.h.b16 %v1223
    %v1610 = vunpack.c.l.b16 %v1224
    %v1611 = vunpack.c.h.b16 %v1224
    %v1612 = vunpack.c.l.b16 %v1225
    %v1613 = vunpack.c.h.b16 %v1225
    %v1614 = vunpack.c.l.b16 %v1226
    %v1615 = vunpack.c.h.b16 %v1226
    %v1616 = vunpack.c.l.b16 %v1227
    %v1617 = vunpack.c.h.b16 %v1227
    %v1618 = vunpack.c.l.b16 %v1228
    %v1619 = vunpack.c.h.b16 %v1228
    %v1620 = vunpack.c.l.b16 %v1229
    %v1621 = vunpack.c.h.b16 %v1229
    %v1622 = vunpack.c.l.b16 %v1230
    %v1623 = vunpack.c.h.b16 %v1230
    %v1624 = vunpack.c.l.b16 %v1231
    %v1625 = vunpack.c.h.b16 %v1231
    %v1626 = vunpack.c.l.b16 %v1232
    %v1627 = vunpack.c.h.b16 %v1232
    %v1628 = vunpack.c.l.b16 %v1233
    %v1629 = vunpack.c.h.b16 %v1233
    %v1630 = vpack.c.b16 %v1376, %v1374
    %v1631 = vpack.c.b16 %v1377, %v1375
    %v1632 = vpack.c.b16 %v1380, %v1378
    %v1633 = vpack.c.b16 %v1381, %v1379
    %v1634 = vpack.c.b16 %v1384, %v1382
    %v1635 = vpack.c.b16 %v1385, %v1383
    %v1636 = vpack.c.b16 %v1388, %v1386
    %v1637 = vpack.c.b16 %v1389, %v1387
    %v1638 = vpack.c.b16 %v1392, %v1390
    %v1639 = vpack.c.b16 %v1393, %v1391
    %v1640 = vpack.c.b16 %v1396, %v1394
    %v1641 = vpack.c.b16 %v1397, %v1395
    %v1642 = vpack.c.b16 %v1400, %v1398
    %v1643 = vpack.c.b16 %v1401, %v1399
    %v1644 = vpack.c.b16 %v1404, %v1402
    %v1645 = vpack.c.b16 %v1405, %v1403
    %v1646 = vpack.c.b16 %v1408, %v1406
    %v1647 = vpack.c.b16 %v1409, %v1407
    %v1648 = vpack.c.b16 %v1412, %v1410
    %v1649 = vpack.c.b16 %v1413, %v1411
    %v1650 = vpack.c.b16 %v1416, %v1414
    %v1651 = vpack.c.b16 %v1417, %v1415
    %v1652 = vpack.c.b16 %v1420, %v1418
    %v1653 = vpack.c.b16 %v1421, %v1419
    %v1654 = vpack.c.b16 %v1424, %v1422
    %v1655 = vpack.c.b16 %v1425, %v1423
    %v1656 = vpack.c.b16 %v1428, %v1426
    %v1657 = vpack.c.b16 %v1429, %v1427
    %v1658 = vpack.c.b16 %v1432, %v1430
    %v1659 = vpack.c.b16 %v1433, %v1431
    %v1660 = vpack.c.b16 %v1436, %v1434
    %v1661 = vpack.c.b16 %v1437, %v1435
    %v1662 = vpack.c.b16 %v1440, %v1438
    %v1663 = vpack.c.b16 %v1441, %v1439
    %v1664 = vpack.c.b16 %v1444, %v1442
    %v1665 = vpack.c.b16 %v1445, %v1443
    %v1666 = vpack.c.b16 %v1448, %v1446
    %v1667 = vpack.c.b16 %v1449, %v1447
    %v1668 = vpack.c.b16 %v1452, %v1450
    %v1669 = vpack.c.b16 %v1453, %v1451
    %v1670 = vpack.c.b16 %v1456, %v1454
    %v1671 = vpack.c.b16 %v1457, %v1455
    %v1672 = vpack.c.b16 %v1460, %v1458
    %v1673 = vpack.c.b16 %v1461, %v1459
    %v1674 = vpack.c.b16 %v1464, %v1462
    %v1675 = vpack.c.b16 %v1465, %v1463
    %v1676 = vpack.c.b16 %v1468, %v1466
    %v1677 = vpack.c.b16 %v1469, %v1467
    %v1678 = vpack.c.b16 %v1472, %v1470
    %v1679 = vpack.c.b16 %v1473, %v1471
    %v1680 = vpack.c.b16 %v1476, %v1474
    %v1681 = vpack.c.b16 %v1477, %v1475
    %v1682 = vpack.c.b16 %v1480, %v1478
    %v1683 = vpack.c.b16 %v1481, %v1479
    %v1684 = vpack.c.b16 %v1484, %v1482
    %v1685 = vpack.c.b16 %v1485, %v1483
    %v1686 = vpack.c.b16 %v1488, %v1486
    %v1687 = vpack.c.b16 %v1489, %v1487
    %v1688 = vpack.c.b16 %v1492, %v1490
    %v1689 = vpack.c.b16 %v1493, %v1491
    %v1690 = vpack.c.b16 %v1496, %v1494
    %v1691 = vpack.c.b16 %v1497, %v1495
    %v1692 = vpack.c.b16 %v1500, %v1498
    %v1693 = vpack.c.b16 %v1501, %v1499
    %v1694 = vpack.c.b16 %v1504, %v1502
    %v1695 = vpack.c.b16 %v1505, %v1503
    %v1696 = vpack.c.b16 %v1508, %v1506
    %v1697 = vpack.c.b16 %v1509, %v1507
    %v1698 = vpack.c.b16 %v1512, %v1510
    %v1699 = vpack.c.b16 %v1513, %v1511
    %v1700 = vpack.c.b16 %v1516, %v1514
    %v1701 = vpack.c.b16 %v1517, %v1515
    %v1702 = vpack.c.b16 %v1520, %v1518
    %v1703 = vpack.c.b16 %v1521, %v1519
    %v1704 = vpack.c.b16 %v1524, %v1522
    %v1705 = vpack.c.b16 %v1525, %v1523
    %v1706 = vpack.c.b16 %v1528, %v1526
    %v1707 = vpack.c.b16 %v1529, %v1527
    %v1708 = vpack.c.b16 %v1532, %v1530
    %v1709 = vpack.c.b16 %v1533, %v1531
    %v1710 = vpack.c.b16 %v1536, %v1534
    %v1711 = vpack.c.b16 %v1537, %v1535
    %v1712 = vpack.c.b16 %v1540, %v1538
    %v1713 = vpack.c.b16 %v1541, %v1539
    %v1714 = vpack.c.b16 %v1544, %v1542
    %v1715 = vpack.c.b16 %v1545, %v1543
    %v1716 = vpack.c.b16 %v1548, %v1546
    %v1717 = vpack.c.b16 %v1549, %v1547
    %v1718 = vpack.c.b16 %v1552, %v1550
    %v1719 = vpack.c.b16 %v1553, %v1551
    %v1720 = vpack.c.b16 %v1556, %v1554
    %v1721 = vpack.c.b16 %v1557, %v1555
    %v1722 = vpack.c.b16 %v1560, %v1558
    %v1723 = vpack.c.b16 %v1561, %v1559
    %v1724 = vpack.c.b16 %v1564, %v1562
    %v1725 = vpack.c.b16 %v1565, %v1563
    %v1726 = vpack.c.b16 %v1568, %v1566
    %v1727 = vpack.c.b16 %v1569, %v1567
    %v1728 = vpack.c.b16 %v1572, %v1570
    %v1729 = vpack.c.b16 %v1573, %v1571
    %v1730 = vpack.c.b16 %v1576, %v1574
    %v1731 = vpack.c.b16 %v1577, %v1575
    %v1732 = vpack.c.b16 %v1580, %v1578
    %v1733 = vpack.c.b16 %v1581, %v1579
    %v1734 = vpack.c.b16 %v1584, %v1582
    %v1735 = vpack.c.b16 %v1585, %v1583
    %v1736 = vpack.c.b16 %v1588, %v1586
    %v1737 = vpack.c.b16 %v1589, %v1587
    %v1738 = vpack.c.b16 %v1592, %v1590
    %v1739 = vpack.c.b16 %v1593, %v1591
    %v1740 = vpack.c.b16 %v1596, %v1594
    %v1741 = vpack.c.b16 %v1597, %v1595
    %v1742 = vpack.c.b16 %v1600, %v1598
    %v1743 = vpack.c.b16 %v1601, %v1599
    %v1744 = vpack.c.b16 %v1604, %v1602
    %v1745 = vpack.c.b16 %v1605, %v1603
    %v1746 = vpack.c.b16 %v1608, %v1606
    %v1747 = vpack.c.b16 %v1609, %v1607
    %v1748 = vpack.c.b16 %v1612, %v1610
    %v1749 = vpack.c.b16 %v1613, %v1611
    %v1750 = vpack.c.b16 %v1616, %v1614
    %v1751 = vpack.c.b16 %v1617, %v1615
    %v1752 = vpack.c.b16 %v1620, %v1618
    %v1753 = vpack.c.b16 %v1621, %v1619
    %v1754 = vpack.c.b16 %v1624, %v1622
    %v1755 = vpack.c.b16 %v1625, %v1623
    %v1756 = vpack.c.b16 %v1628, %v1626
    %v1757 = vpack.c.b16 %v1629, %v1627
    %1886 = vmatprep.subr.bf16.mxu0 %v1631
    %1887 = vmatpush1.bf16.msra.mxu0 %v1630
    %1888 = vmatprep.subr.bf16.mxu0 %v1633
    %1889 = vmatpush1.bf16.msra.mxu0 %v1632
    %1890 = vmatprep.subr.bf16.mxu0 %v1635
    %1891 = vmatpush1.bf16.msra.mxu0 %v1634
    %1892 = vmatprep.subr.bf16.mxu0 %v1637
    %1893 = vmatpush1.bf16.msra.mxu0 %v1636
    %1894 = vmatprep.subr.bf16.mxu0 %v1639
    %1895 = vmatpush1.bf16.msra.mxu0 %v1638
    %1896 = vmatprep.subr.bf16.mxu0 %v1641
    %1897 = vmatpush1.bf16.msra.mxu0 %v1640
    %1898 = vmatprep.subr.bf16.mxu0 %v1643
    %1899 = vmatpush1.bf16.msra.mxu0 %v1642
    %1900 = vmatprep.subr.bf16.mxu0 %v1645
    %1901 = vmatpush1.bf16.msra.mxu0 %v1644
    %1902 = vmatprep.subr.bf16.mxu0 %v1647
    %1903 = vmatpush1.bf16.msra.mxu0 %v1646
    %1904 = vmatprep.subr.bf16.mxu0 %v1649
    %1905 = vmatpush1.bf16.msra.mxu0 %v1648
    %1906 = vmatprep.subr.bf16.mxu0 %v1651
    %1907 = vmatpush1.bf16.msra.mxu0 %v1650
    %1908 = vmatprep.subr.bf16.mxu0 %v1653
    %1909 = vmatpush1.bf16.msra.mxu0 %v1652
    %1910 = vmatprep.subr.bf16.mxu0 %v1655
    %1911 = vmatpush1.bf16.msra.mxu0 %v1654
    %1912 = vmatprep.subr.bf16.mxu0 %v1657
    %1913 = vmatpush1.bf16.msra.mxu0 %v1656
    %1914 = vmatprep.subr.bf16.mxu0 %v1659
    %1915 = vmatpush1.bf16.msra.mxu0 %v1658
    %1916 = vmatprep.subr.bf16.mxu0 %v1661
    %1917 = vmatpush1.bf16.msra.mxu0 %v1660
    %1918 = vmatprep.mubr.bf16.mxu0 %v1099
    %1919 = vmatmul.mubr.bf16.gmra.mrb[0].mxu0 %v1098
    %v1920 = vpop.f32.mrb[0].mxu0
    %v1921 = vadd.f32 %v1239, %v1920
    %v1922 = vpop.f32.mrb[0].mxu0
    %v1923 = vadd.f32 %v1243, %v1922
    %v1924 = vpop.f32.mrb[0].mxu0
    %v1925 = vadd.f32 %v1239, %v1924
    %v1926 = vpop.f32.mrb[0].mxu0
    %v1927 = vadd.f32 %v1243, %v1926
    %1928 = vdwg.mxu0
    %1929 = vmatprep.subr.bf16.mxu0 %v1663
    %1930 = vmatpush1.bf16.msra.mxu0 %v1662
    %1931 = vmatprep.subr.bf16.mxu0 %v1665
    %1932 = vmatpush1.bf16.msra.mxu0 %v1664
    %1933 = vmatprep.subr.bf16.mxu0 %v1667
    %1934 = vmatpush1.bf16.msra.mxu0 %v1666
    %1935 = vmatprep.subr.bf16.mxu0 %v1669
    %1936 = vmatpush1.bf16.msra.mxu0 %v1668
    %1937 = vmatprep.subr.bf16.mxu0 %v1671
    %1938 = vmatpush1.bf16.msra.mxu0 %v1670
    %1939 = vmatprep.subr.bf16.mxu0 %v1673
    %1940 = vmatpush1.bf16.msra.mxu0 %v1672
    %1941 = vmatprep.subr.bf16.mxu0 %v1675
    %1942 = vmatpush1.bf16.msra.mxu0 %v1674
    %1943 = vmatprep.subr.bf16.mxu0 %v1677
    %1944 = vmatpush1.bf16.msra.mxu0 %v1676
    %1945 = vmatprep.subr.bf16.mxu0 %v1679
    %1946 = vmatpush1.bf16.msra.mxu0 %v1678
    %1947 = vmatprep.subr.bf16.mxu0 %v1681
    %1948 = vmatpush1.bf16.msra.mxu0 %v1680
    %1949 = vmatprep.subr.bf16.mxu0 %v1683
    %1950 = vmatpush1.bf16.msra.mxu0 %v1682
    %1951 = vmatprep.subr.bf16.mxu0 %v1685
    %1952 = vmatpush1.bf16.msra.mxu0 %v1684
    %1953 = vmatprep.subr.bf16.mxu0 %v1687
    %1954 = vmatpush1.bf16.msra.mxu0 %v1686
    %1955 = vmatprep.subr.bf16.mxu0 %v1689
    %1956 = vmatpush1.bf16.msra.mxu0 %v1688
    %1957 = vmatprep.subr.bf16.mxu0 %v1691
    %1958 = vmatpush1.bf16.msra.mxu0 %v1690
    %1959 = vmatprep.subr.bf16.mxu0 %v1693
    %1960 = vmatpush1.bf16.msra.mxu0 %v1692
    %1961 = vmatprep.mubr.bf16.mxu0 %v1101
    %1962 = vmatmul.mubr.bf16.gmra.mrb[0].mxu0 %v1100
    %v1963 = vpop.f32.mrb[0].mxu0
    %v1964 = vadd.f32 %v1921, %v1963
    %v1965 = vpop.f32.mrb[0].mxu0
    %v1966 = vadd.f32 %v1923, %v1965
    %v1967 = vpop.f32.mrb[0].mxu0
    %v1968 = vadd.f32 %v1925, %v1967
    %v1969 = vpop.f32.mrb[0].mxu0
    %v1970 = vadd.f32 %v1927, %v1969
    %1971 = vdwg.mxu0
    %1972 = vmatprep.subr.bf16.mxu0 %v1695
    %1973 = vmatpush1.bf16.msra.mxu0 %v1694
    %1974 = vmatprep.subr.bf16.mxu0 %v1697
    %1975 = vmatpush1.bf16.msra.mxu0 %v1696
    %1976 = vmatprep.subr.bf16.mxu0 %v1699
    %1977 = vmatpush1.bf16.msra.mxu0 %v1698
    %1978 = vmatprep.subr.bf16.mxu0 %v1701
    %1979 = vmatpush1.bf16.msra.mxu0 %v1700
    %1980 = vmatprep.subr.bf16.mxu0 %v1703
    %1981 = vmatpush1.bf16.msra.mxu0 %v1702
    %1982 = vmatprep.subr.bf16.mxu0 %v1705
    %1983 = vmatpush1.bf16.msra.mxu0 %v1704
    %1984 = vmatprep.subr.bf16.mxu0 %v1707
    %1985 = vmatpush1.bf16.msra.mxu0 %v1706
    %1986 = vmatprep.subr.bf16.mxu0 %v1709
    %1987 = vmatpush1.bf16.msra.mxu0 %v1708
    %1988 = vmatprep.subr.bf16.mxu0 %v1711
    %1989 = vmatpush1.bf16.msra.mxu0 %v1710
    %1990 = vmatprep.subr.bf16.mxu0 %v1713
    %1991 = vmatpush1.bf16.msra.mxu0 %v1712
    %1992 = vmatprep.subr.bf16.mxu0 %v1715
    %1993 = vmatpush1.bf16.msra.mxu0 %v1714
    %1994 = vmatprep.subr.bf16.mxu0 %v1717
    %1995 = vmatpush1.bf16.msra.mxu0 %v1716
    %1996 = vmatprep.subr.bf16.mxu0 %v1719
    %1997 = vmatpush1.bf16.msra.mxu0 %v1718
    %1998 = vmatprep.subr.bf16.mxu0 %v1721
    %1999 = vmatpush1.bf16.msra.mxu0 %v1720
    %2000 = vmatprep.subr.bf16.mxu0 %v1723
    %2001 = vmatpush1.bf16.msra.mxu0 %v1722
    %2002 = vmatprep.subr.bf16.mxu0 %v1725
    %2003 = vmatpush1.bf16.msra.mxu0 %v1724
    %2004 = vmatprep.mubr.bf16.mxu0 %v1103
    %2005 = vmatmul.mubr.bf16.gmra.mrb[0].mxu0 %v1102
    %v2006 = vpop.f32.mrb[0].mxu0
    %v2007 = vadd.f32 %v1964, %v2006
    %v2008 = vpop.f32.mrb[0].mxu0
    %v2009 = vadd.f32 %v1966, %v2008
    %v2010 = vpop.f32.mrb[0].mxu0
    %v2011 = vadd.f32 %v1968, %v2010
    %v2012 = vpop.f32.mrb[0].mxu0
    %v2013 = vadd.f32 %v1970, %v2012
    %2014 = vdwg.mxu0
    %2015 = vmatprep.subr.bf16.mxu0 %v1727
    %2016 = vmatpush1.bf16.msra.mxu0 %v1726
    %2017 = vmatprep.subr.bf16.mxu0 %v1729
    %2018 = vmatpush1.bf16.msra.mxu0 %v1728
    %2019 = vmatprep.subr.bf16.mxu0 %v1731
    %2020 = vmatpush1.bf16.msra.mxu0 %v1730
    %2021 = vmatprep.subr.bf16.mxu0 %v1733
    %2022 = vmatpush1.bf16.msra.mxu0 %v1732
    %2023 = vmatprep.subr.bf16.mxu0 %v1735
    %2024 = vmatpush1.bf16.msra.mxu0 %v1734
    %2025 = vmatprep.subr.bf16.mxu0 %v1737
    %2026 = vmatpush1.bf16.msra.mxu0 %v1736
    %2027 = vmatprep.subr.bf16.mxu0 %v1739
    %2028 = vmatpush1.bf16.msra.mxu0 %v1738
    %2029 = vmatprep.subr.bf16.mxu0 %v1741
    %2030 = vmatpush1.bf16.msra.mxu0 %v1740
    %2031 = vmatprep.subr.bf16.mxu0 %v1743
    %2032 = vmatpush1.bf16.msra.mxu0 %v1742
    %2033 = vmatprep.subr.bf16.mxu0 %v1745
    %2034 = vmatpush1.bf16.msra.mxu0 %v1744
    %2035 = vmatprep.subr.bf16.mxu0 %v1747
    %2036 = vmatpush1.bf16.msra.mxu0 %v1746
    %2037 = vmatprep.subr.bf16.mxu0 %v1749
    %2038 = vmatpush1.bf16.msra.mxu0 %v1748
    %2039 = vmatprep.subr.bf16.mxu0 %v1751
    %2040 = vmatpush1.bf16.msra.mxu0 %v1750
    %2041 = vmatprep.subr.bf16.mxu0 %v1753
    %2042 = vmatpush1.bf16.msra.mxu0 %v1752
    %2043 = vmatprep.subr.bf16.mxu0 %v1755
    %2044 = vmatpush1.bf16.msra.mxu0 %v1754
    %2045 = vmatprep.subr.bf16.mxu0 %v1757
    %2046 = vmatpush1.bf16.msra.mxu0 %v1756
    %2047 = vmatprep.mubr.bf16.mxu0 %v1105
    %2048 = vmatmul.mubr.bf16.gmra.mrb[0].mxu0 %v1104
    %v2049 = vpop.f32.mrb[0].mxu0
    %v2050 = vadd.f32 %v2007, %v2049
    %v2051 = vpop.f32.mrb[0].mxu0
    %v2052 = vadd.f32 %v2009, %v2051
    %v2053 = vpop.f32.mrb[0].mxu0
    %v2054 = vadd.f32 %v2011, %v2053
    %v2055 = vpop.f32.mrb[0].mxu0
    %v2056 = vadd.f32 %v2013, %v2055
    %2057 = vdwg.mxu0
    %v2058 = vmax.f32 %v2050, 0.0
    %v2059 = vmax.f32 %v2052, 0.0
    %v2060 = vmax.f32 %v2054, 0.0
    %v2061 = vmax.f32 %v2056, 0.0
    %v2062 = vpack.c.bf16 %v2060, %v2058
    %v2063 = vpack.c.bf16 %v2061, %v2059
    %v2064 = vld [vmem:[#allocation10] sm:$0xf]
    %v2065 = vld [vmem:[#allocation10 + $0x4] sm:$0xf]
    %v2066 = vld [vmem:[#allocation10 + $0x8] sm:$0xf]
    %v2067 = vld [vmem:[#allocation10 + $0xc] sm:$0xf]
    %v2068 = vld [vmem:[#allocation10 + $0x10] sm:$0xf]
    %v2069 = vld [vmem:[#allocation10 + $0x14] sm:$0xf]
    %v2070 = vld [vmem:[#allocation10 + $0x18] sm:$0xf]
    %v2071 = vld [vmem:[#allocation10 + $0x1c] sm:$0xf]
    %v2072 = vld [vmem:[#allocation10 + $0x20] sm:$0xf]
    %v2073 = vld [vmem:[#allocation10 + $0x24] sm:$0xf]
    %v2074 = vld [vmem:[#allocation10 + $0x28] sm:$0xf]
    %v2075 = vld [vmem:[#allocation10 + $0x2c] sm:$0xf]
    %v2076 = vld [vmem:[#allocation10 + $0x30] sm:$0xf]
    %v2077 = vld [vmem:[#allocation10 + $0x34] sm:$0xf]
    %v2078 = vld [vmem:[#allocation10 + $0x38] sm:$0xf]
    %v2079 = vld [vmem:[#allocation10 + $0x3c] sm:$0xf]
    %v2080 = vld [vmem:[#allocation10 + $0x40] sm:$0xf]
    %v2081 = vld [vmem:[#allocation10 + $0x44] sm:$0xf]
    %v2082 = vld [vmem:[#allocation10 + $0x48] sm:$0xf]
    %v2083 = vld [vmem:[#allocation10 + $0x4c] sm:$0xf]
    %v2084 = vld [vmem:[#allocation10 + $0x50] sm:$0xf]
    %v2085 = vld [vmem:[#allocation10 + $0x54] sm:$0xf]
    %v2086 = vld [vmem:[#allocation10 + $0x58] sm:$0xf]
    %v2087 = vld [vmem:[#allocation10 + $0x5c] sm:$0xf]
    %v2088 = vld [vmem:[#allocation10 + $0x60] sm:$0xf]
    %v2089 = vld [vmem:[#allocation10 + $0x64] sm:$0xf]
    %v2090 = vld [vmem:[#allocation10 + $0x68] sm:$0xf]
    %v2091 = vld [vmem:[#allocation10 + $0x6c] sm:$0xf]
    %v2092 = vld [vmem:[#allocation10 + $0x70] sm:$0xf]
    %v2093 = vld [vmem:[#allocation10 + $0x74] sm:$0xf]
    %v2094 = vld [vmem:[#allocation10 + $0x78] sm:$0xf]
    %v2095 = vld [vmem:[#allocation10 + $0x7c] sm:$0xf]
    %v2096 = vld [vmem:[%s6] sm:$0x1]
    %v2098 = vlaneseq
    %v2099 = vshrl.u32 %v2098, 7
    %v2100 = vsub.s32 0, %v2099
    %v2101 = vrot.slane %v2096, %v2100
    %v2135 = vunpack.c.l.b16 %v2064
    %v2136 = vunpack.c.l.b16 %v2065
    %v2137 = vunpack.c.l.b16 %v2066
    %v2138 = vunpack.c.l.b16 %v2067
    %v2139 = vunpack.c.l.b16 %v2068
    %v2140 = vunpack.c.l.b16 %v2069
    %v2141 = vunpack.c.l.b16 %v2070
    %v2142 = vunpack.c.l.b16 %v2071
    %v2143 = vunpack.c.l.b16 %v2072
    %v2144 = vunpack.c.l.b16 %v2073
    %v2145 = vunpack.c.l.b16 %v2074
    %v2146 = vunpack.c.l.b16 %v2075
    %v2147 = vunpack.c.l.b16 %v2076
    %v2148 = vunpack.c.l.b16 %v2077
    %v2149 = vunpack.c.l.b16 %v2078
    %v2150 = vunpack.c.l.b16 %v2079
    %v2151 = vunpack.c.l.b16 %v2080
    %v2152 = vunpack.c.l.b16 %v2081
    %v2153 = vunpack.c.l.b16 %v2082
    %v2154 = vunpack.c.l.b16 %v2083
    %v2155 = vunpack.c.l.b16 %v2084
    %v2156 = vunpack.c.l.b16 %v2085
    %v2157 = vunpack.c.l.b16 %v2086
    %v2158 = vunpack.c.l.b16 %v2087
    %v2159 = vunpack.c.l.b16 %v2088
    %v2160 = vunpack.c.l.b16 %v2089
    %v2161 = vunpack.c.l.b16 %v2090
    %v2162 = vunpack.c.l.b16 %v2091
    %v2163 = vunpack.c.l.b16 %v2092
    %v2164 = vunpack.c.l.b16 %v2093
    %v2165 = vunpack.c.l.b16 %v2094
    %v2166 = vunpack.c.l.b16 %v2095
    %v2167 = vpack.c.b16 %v2136, %v2135
    %v2168 = vpack.c.b16 %v2138, %v2137
    %v2169 = vpack.c.b16 %v2140, %v2139
    %v2170 = vpack.c.b16 %v2142, %v2141
    %v2171 = vpack.c.b16 %v2144, %v2143
    %v2172 = vpack.c.b16 %v2146, %v2145
    %v2173 = vpack.c.b16 %v2148, %v2147
    %v2174 = vpack.c.b16 %v2150, %v2149
    %v2175 = vpack.c.b16 %v2152, %v2151
    %v2176 = vpack.c.b16 %v2154, %v2153
    %v2177 = vpack.c.b16 %v2156, %v2155
    %v2178 = vpack.c.b16 %v2158, %v2157
    %v2179 = vpack.c.b16 %v2160, %v2159
    %v2180 = vpack.c.b16 %v2162, %v2161
    %v2181 = vpack.c.b16 %v2164, %v2163
    %v2182 = vpack.c.b16 %v2166, %v2165
    %2199 = vmatprep.subr.bf16.mxu0 0
    %2200 = vmatpush1.bf16.msra.mxu0 %v2167
    %2201 = vmatprep.subr.bf16.mxu0 0
    %2202 = vmatpush1.bf16.msra.mxu0 %v2168
    %2203 = vmatprep.subr.bf16.mxu0 0
    %2204 = vmatpush1.bf16.msra.mxu0 %v2169
    %2205 = vmatprep.subr.bf16.mxu0 0
    %2206 = vmatpush1.bf16.msra.mxu0 %v2170
    %2207 = vmatprep.subr.bf16.mxu0 0
    %2208 = vmatpush1.bf16.msra.mxu0 %v2171
    %2209 = vmatprep.subr.bf16.mxu0 0
    %2210 = vmatpush1.bf16.msra.mxu0 %v2172
    %2211 = vmatprep.subr.bf16.mxu0 0
    %2212 = vmatpush1.bf16.msra.mxu0 %v2173
    %2213 = vmatprep.subr.bf16.mxu0 0
    %2214 = vmatpush1.bf16.msra.mxu0 %v2174
    %2215 = vmatprep.subr.bf16.mxu0 0
    %2216 = vmatpush1.bf16.msra.mxu0 %v2175
    %2217 = vmatprep.subr.bf16.mxu0 0
    %2218 = vmatpush1.bf16.msra.mxu0 %v2176
    %2219 = vmatprep.subr.bf16.mxu0 0
    %2220 = vmatpush1.bf16.msra.mxu0 %v2177
    %2221 = vmatprep.subr.bf16.mxu0 0
    %2222 = vmatpush1.bf16.msra.mxu0 %v2178
    %2223 = vmatprep.subr.bf16.mxu0 0
    %2224 = vmatpush1.bf16.msra.mxu0 %v2179
    %2225 = vmatprep.subr.bf16.mxu0 0
    %2226 = vmatpush1.bf16.msra.mxu0 %v2180
    %2227 = vmatprep.subr.bf16.mxu0 0
    %2228 = vmatpush1.bf16.msra.mxu0 %v2181
    %2229 = vmatprep.subr.bf16.mxu0 0
    %2230 = vmatpush1.bf16.msra.mxu0 %v2182
    %2231 = vmatprep.mubr.bf16.mxu0 %v2063
    %2232 = vmatmul.mubr.bf16.gmra.mrb[0].mxu0 %v2062
    %v2233 = vpop.f32.mrb[0].mxu0
    %v2234 = vadd.f32 %v2101, %v2233
    %v2235 = vpop.f32.mrb[0].mxu0
    %v2236 = vpop.f32.mrb[0].mxu0
    %v2237 = vadd.f32 %v2101, %v2236
    %v2238 = vpop.f32.mrb[0].mxu0
    %2239 = vdwg.mxu0
    %2240 = vst [vmem:[#allocation11] sm:$0xff] %v2234
    %2241 = vst [vmem:[#allocation11 + $0x8] sm:$0xff] %v2237
    // Predicated region
    $region50: #{tpu_custom_call.1} parent=1 // pred_check
      _
    $region51: #{tpu_custom_call.1} parent=1 // pred_check_branch
      %2243 = sbr.rel (0) target = $region53
    $region52: #{tpu_custom_call.1} parent=1 // pred_region
      %s2245 = ssub.s32 256, 256
      %2246 = vsyncadd [#allocation4], %s2245
      %s2247 = sshll.u32 [#allocation11], 4
      %s2248 = int_to_ptr.vmem [resolvable:$true] %s2247
      %2253 = dma.vmem_to_hbm [thread:$0]  %s2248, 256, %s7, [#allocation4], 128, 128, 8
    $region53: #{tpu_custom_call.1} parent=1 // pred_fallthru
      _
    // Predicated region
    $region54: #{tpu_custom_call.1} parent=1 // pred_check
      _
    $region55: #{tpu_custom_call.1} parent=1 // pred_check_branch
      %2255 = sbr.rel (0) target = $region57
    $region56: #{tpu_custom_call.1} parent=1 // pred_region
      %2256 = dma.done [#allocation4], 256
    $region57: #{tpu_custom_call.1} parent=1 // pred_fallthru
      _
    %2257 = vsyncpa [#allocation3], 1
    %2258 = vsyncpa [#allocation6], 1
    %2259 = vsyncpa [#allocation9], 1
    %2260 = vsyncpa [#allocation4], 1

</llo_original>
